<compile_context>
chip_gen: v5e
topology: v5e:2x2
jax: 0.10.0
libtpu: 0.0.40
codegen_flags: <defaults>
</compile_context>

<pallas_src>
import jax
import jax.numpy as jnp
from jax.experimental import pallas as pl
from jax.experimental.pallas import tpu as pltpu


def fused_basic_block_kernel(x_ref, w1_ref, b1_ref, w2_ref, b2_ref,
                             o_ref, tp_ref):
    # x_ref : (1, H, W, Cin)   f32   residual + conv1 input
    # w1_ref: (Cin, Cmid)      bf16  1x1 conv weight, BN1 scale pre-folded
    # b1_ref: (1, Cmid)        f32   folded BN1 bias
    # w2_ref: (9*Cmid, Cout)   bf16  3x3 conv weight (dy,dx,cin), BN2 scale folded
    # b2_ref: (1, Cout)        f32   folded BN2 bias
    # tp_ref: (H+2, W+2, Cmid) bf16  VMEM scratch, zero-padded intermediate
    _, H, W, Cin = x_ref.shape
    Cmid = w1_ref.shape[1]
    Cout = w2_ref.shape[1]

    x = x_ref[0].reshape(H * W, Cin)                     # f32, kept for residual

    # ---- conv1 (1x1 = channel matmul) + BN1 bias + LeakyReLU(0.1) ----------
    t = jnp.dot(x.astype(jnp.bfloat16), w1_ref[...],
                preferred_element_type=jnp.float32)      # (H*W, Cmid) f32
    t = t + b1_ref[...]
    t = jnp.maximum(t, 0.1 * t)                          # LeakyReLU(0.1)

    # ---- zero-padded intermediate stays entirely in VMEM (bf16) ------------
    tp_ref[...] = jnp.zeros_like(tp_ref)                 # border = 0 every step
    tp_ref[1:H + 1, 1:W + 1, :] = t.reshape(H, W, Cmid).astype(jnp.bfloat16)
    tp = tp_ref[...]                                     # (H+2, W+2, Cmid) bf16

    # ---- im2col: one (H*W, 9*Cmid) operand, single K = 9*Cmid matmul -------
    cols = [tp[dy:dy + H, dx:dx + W, :]
            for dy in range(3) for dx in range(3)]       # each (H, W, Cmid) bf16
    patches = jnp.concatenate(cols, axis=-1)             # (H, W, 9*Cmid)
    patches = patches.reshape(H * W, 9 * Cmid)

    acc = jnp.dot(patches, w2_ref[...],
                  preferred_element_type=jnp.float32)    # (H*W, Cout) f32

    # ---- BN2 bias + LeakyReLU(0.1) + residual add ---------------------------
    out = acc + b2_ref[...]
    out = jnp.maximum(out, 0.1 * out)
    out = out + x                                        # residual (Cout == Cin)
    o_ref[0] = out.reshape(H, W, Cout)


def basic_block_forward(x, w1, s1, b1, w2, s2, b2):
    N, H, W, Cin = x.shape
    Cmid = w1.shape[1]
    Cout = w2.shape[3]
    assert Cout == Cin, "residual add requires planes[1] == inplanes"

    # Fold BN scale into the conv weight columns (exact in f32), then cast to
    # bf16 for the MXU; f32 accumulation happens inside the kernel.
    w1_bf = (w1 * s1).astype(jnp.bfloat16)                          # (Cin, Cmid)
    w2_bf = (w2 * s2.reshape(1, 1, 1, Cout)).reshape(
        9 * Cmid, Cout).astype(jnp.bfloat16)                        # (9*Cmid, Cout)

    out = pl.pallas_call(
        fused_basic_block_kernel,
        out_shape=jax.ShapeDtypeStruct((N, H, W, Cout), jnp.float32),
        grid_spec=pltpu.PrefetchScalarGridSpec(
            num_scalar_prefetch=0,
            grid=(N,),
            in_specs=[
                pl.BlockSpec((1, H, W, Cin), lambda n: (n, 0, 0, 0)),
                pl.BlockSpec((Cin, Cmid), lambda n: (0, 0)),
                pl.BlockSpec((1, Cmid), lambda n: (0, 0)),
                pl.BlockSpec((9 * Cmid, Cout), lambda n: (0, 0)),
                pl.BlockSpec((1, Cout), lambda n: (0, 0)),
            ],
            out_specs=pl.BlockSpec((1, H, W, Cout), lambda n: (n, 0, 0, 0)),
            scratch_shapes=[pltpu.VMEM((H + 2, W + 2, Cmid), jnp.bfloat16)],
        ),
        compiler_params=pltpu.CompilerParams(
            dimension_semantics=("parallel",)),
    )(x, w1_bf, b1, w2_bf, b2)
    return out


def reference_forward(x, w1, s1, b1, w2, s2, b2):
    """Pure-JAX f32 reference of the same semantics (for correctness check)."""
    t = jnp.einsum('nhwc,cd->nhwd', x, w1)
    t = t * s1 + b1
    t = jnp.where(t > 0, t, 0.1 * t)
    tp = jnp.pad(t, ((0, 0), (1, 1), (1, 1), (0, 0)))
    H, W = x.shape[1], x.shape[2]
    out = jnp.zeros(x.shape[:3] + (w2.shape[3],), jnp.float32)
    for dy in range(3):
        for dx in range(3):
            out = out + jnp.einsum('nhwc,cd->nhwd',
                                   tp[:, dy:dy + H, dx:dx + W, :], w2[dy, dx])
    out = out * s2 + b2
    out = jnp.where(out > 0, out, 0.1 * out)
    return out + x


def make_params(key, inplanes, planes):
    c_mid, c_out = planes
    eps = 1e-5
    ks = jax.random.split(key, 10)
    w1 = jax.random.normal(ks[0], (inplanes, c_mid), jnp.float32) * 0.1
    w2 = jax.random.normal(ks[1], (3, 3, c_mid, c_out), jnp.float32) * 0.1
    g1 = 1.0 + 0.1 * jax.random.normal(ks[2], (c_mid,), jnp.float32)
    beta1 = 0.1 * jax.random.normal(ks[3], (c_mid,), jnp.float32)
    mu1 = 0.1 * jax.random.normal(ks[4], (c_mid,), jnp.float32)
    var1 = jax.random.uniform(ks[5], (c_mid,), jnp.float32, 0.5, 1.5)
    g2 = 1.0 + 0.1 * jax.random.normal(ks[6], (c_out,), jnp.float32)
    beta2 = 0.1 * jax.random.normal(ks[7], (c_out,), jnp.float32)
    mu2 = 0.1 * jax.random.normal(ks[8], (c_out,), jnp.float32)
    var2 = jax.random.uniform(ks[9], (c_out,), jnp.float32, 0.5, 1.5)
    # Fold BN (inference mode) into per-channel scale/bias.
    s1 = g1 / jnp.sqrt(var1 + eps)
    b1 = beta1 - mu1 * s1
    s2 = g2 / jnp.sqrt(var2 + eps)
    b2 = beta2 - mu2 * s2
    return (w1, s1.reshape(1, -1), b1.reshape(1, -1),
            w2, s2.reshape(1, -1), b2.reshape(1, -1))


if __name__ == "__main__":
    # BasicBlock(inplanes=32, planes=(16, 32)); input x: (N=2, H=16, W=16, C=32)
    inplanes, planes = 32, (16, 32)
    N, H, W = 2, 16, 16

    key = jax.random.PRNGKey(0)
    kx, kp = jax.random.split(key)
    x = jax.random.normal(kx, (N, H, W, inplanes), jnp.float32)
    w1, s1, b1, w2, s2, b2 = make_params(kp, inplanes, planes)

    out = basic_block_forward(x, w1, s1, b1, w2, s2, b2)
    out = jax.block_until_ready(out)

    ref = reference_forward(x, w1, s1, b1, w2, s2, b2)
    assert out.shape == (N, H, W, planes[1])
    # bf16 MXU inputs (f32 accumulation) => relaxed tolerance vs f32 reference.
    assert jnp.max(jnp.abs(out - ref)) < 7.5e-2, "mismatch vs pure-JAX reference"
    print("KERNEL_OK")
</pallas_src>

<mosaic_0001>
module attributes {stable_mosaic.version = 11 : i64} {
  func.func @fused_basic_block_kernel(%arg0: i32, %arg1: memref<1x16x16x32xf32, #tpu.memory_space<vmem>>, %arg2: memref<32x16xbf16, #tpu.memory_space<vmem>>, %arg3: memref<1x16xf32, #tpu.memory_space<vmem>>, %arg4: memref<144x32xbf16, #tpu.memory_space<vmem>>, %arg5: memref<1x32xf32, #tpu.memory_space<vmem>>, %arg6: memref<1x16x16x32xf32, #tpu.memory_space<vmem>>, %arg7: memref<18x18x16xbf16, #tpu.memory_space<vmem>>) attributes {dimension_semantics = [#tpu.dimension_semantics<parallel>], iteration_bounds = array<i64: 2>, scalar_prefetch = 0 : i64, scratch_operands = 1 : i64, tpu.core_type = #tpu.core_type<tc>, window_params = [{transform_indices = @transform_0, window_bounds = array<i64: 1, 16, 16, 32>}, {pipeline_mode = #tpu.pipeline_mode<synchronous>, transform_indices = @transform_1, window_bounds = array<i64: 32, 16>}, {pipeline_mode = #tpu.pipeline_mode<synchronous>, transform_indices = @transform_2, window_bounds = array<i64: 1, 16>}, {pipeline_mode = #tpu.pipeline_mode<synchronous>, transform_indices = @transform_3, window_bounds = array<i64: 144, 32>}, {pipeline_mode = #tpu.pipeline_mode<synchronous>, transform_indices = @transform_4, window_bounds = array<i64: 1, 32>}, {transform_indices = @transform_5, window_bounds = array<i64: 1, 16, 16, 32>}]} {
    %c0 = arith.constant 0 : index
    %c0_0 = arith.constant 0 : index
    %c0_1 = arith.constant 0 : index
    %c0_2 = arith.constant 0 : index
    %0 = vector.load %arg1[%c0, %c0_0, %c0_1, %c0_2] : memref<1x16x16x32xf32, #tpu.memory_space<vmem>>, vector<1x16x16x32xf32>
    %1 = vector.shape_cast %0 : vector<1x16x16x32xf32> to vector<16x16x32xf32>
    %2 = vector.shape_cast %1 : vector<16x16x32xf32> to vector<256x32xf32>
    %3 = arith.truncf %2 : vector<256x32xf32> to vector<256x32xbf16>
    %c0_3 = arith.constant 0 : index
    %c0_4 = arith.constant 0 : index
    %4 = vector.load %arg2[%c0_3, %c0_4] : memref<32x16xbf16, #tpu.memory_space<vmem>>, vector<32x16xbf16>
    %cst = arith.constant dense<0.000000e+00> : vector<256x16xf32>
    %5 = tpu.matmul %3, %4, %cst {dimension_numbers = #tpu.dot_dimension_numbers<[1], [0], [0], [1], [0, 0, 1, 1], [], []>} : vector<256x32xbf16>, vector<32x16xbf16>, vector<256x16xf32> -> vector<256x16xf32>
    %c0_5 = arith.constant 0 : index
    %c0_6 = arith.constant 0 : index
    %6 = vector.load %arg3[%c0_5, %c0_6] : memref<1x16xf32, #tpu.memory_space<vmem>>, vector<1x16xf32>
    %7 = vector.broadcast %6 : vector<1x16xf32> to vector<256x16xf32>
    %8 = arith.addf %5, %7 : vector<256x16xf32>
    %cst_7 = arith.constant 1.000000e-01 : f32
    %9 = vector.broadcast %cst_7 : f32 to vector<256x16xf32>
    %10 = arith.mulf %9, %8 : vector<256x16xf32>
    %11 = arith.maximumf %8, %10 : vector<256x16xf32>
    %cst_8 = arith.constant 0.000000e+00 : bf16
    %12 = vector.broadcast %cst_8 : bf16 to vector<18x18x16xbf16>
    %c0_9 = arith.constant 0 : index
    %c0_10 = arith.constant 0 : index
    %c0_11 = arith.constant 0 : index
    %13 = vector.load %arg7[%c0_9, %c0_10, %c0_11] : memref<18x18x16xbf16, #tpu.memory_space<vmem>>, vector<18x18x16xbf16>
    tpu.vector_store %arg7[%c0_9, %c0_10, %c0_11], %12 {strides = array<i32>} : memref<18x18x16xbf16, #tpu.memory_space<vmem>>, vector<18x18x16xbf16>,
    %14 = vector.shape_cast %11 : vector<256x16xf32> to vector<16x16x16xf32>
    %15 = arith.truncf %14 : vector<16x16x16xf32> to vector<16x16x16xbf16>
    %c1 = arith.constant 1 : index
    %c1_12 = arith.constant 1 : index
    %c0_13 = arith.constant 0 : index
    %16 = vector.load %arg7[%c1, %c1_12, %c0_13] : memref<18x18x16xbf16, #tpu.memory_space<vmem>>, vector<16x16x16xbf16>
    tpu.vector_store %arg7[%c1, %c1_12, %c0_13], %15 {strides = array<i32>} : memref<18x18x16xbf16, #tpu.memory_space<vmem>>, vector<16x16x16xbf16>,
    %c0_14 = arith.constant 0 : index
    %c0_15 = arith.constant 0 : index
    %c0_16 = arith.constant 0 : index
    %17 = vector.load %arg7[%c0_14, %c0_15, %c0_16] : memref<18x18x16xbf16, #tpu.memory_space<vmem>>, vector<18x18x16xbf16>
    %18 = vector.extract_strided_slice %17 {offsets = [0, 0, 0], sizes = [16, 16, 16], strides = [1, 1, 1]} : vector<18x18x16xbf16> to vector<16x16x16xbf16>
    %19 = vector.extract_strided_slice %17 {offsets = [0, 1, 0], sizes = [16, 16, 16], strides = [1, 1, 1]} : vector<18x18x16xbf16> to vector<16x16x16xbf16>
    %20 = vector.extract_strided_slice %17 {offsets = [0, 2, 0], sizes = [16, 16, 16], strides = [1, 1, 1]} : vector<18x18x16xbf16> to vector<16x16x16xbf16>
    %21 = vector.extract_strided_slice %17 {offsets = [1, 0, 0], sizes = [16, 16, 16], strides = [1, 1, 1]} : vector<18x18x16xbf16> to vector<16x16x16xbf16>
    %22 = vector.extract_strided_slice %17 {offsets = [1, 1, 0], sizes = [16, 16, 16], strides = [1, 1, 1]} : vector<18x18x16xbf16> to vector<16x16x16xbf16>
    %23 = vector.extract_strided_slice %17 {offsets = [1, 2, 0], sizes = [16, 16, 16], strides = [1, 1, 1]} : vector<18x18x16xbf16> to vector<16x16x16xbf16>
    %24 = vector.extract_strided_slice %17 {offsets = [2, 0, 0], sizes = [16, 16, 16], strides = [1, 1, 1]} : vector<18x18x16xbf16> to vector<16x16x16xbf16>
    %25 = vector.extract_strided_slice %17 {offsets = [2, 1, 0], sizes = [16, 16, 16], strides = [1, 1, 1]} : vector<18x18x16xbf16> to vector<16x16x16xbf16>
    %26 = vector.extract_strided_slice %17 {offsets = [2, 2, 0], sizes = [16, 16, 16], strides = [1, 1, 1]} : vector<18x18x16xbf16> to vector<16x16x16xbf16>
    %27 = tpu.concatenate %18, %19, %20, %21, %22, %23, %24, %25, %26 in 2 : vector<16x16x16xbf16>, vector<16x16x16xbf16>, vector<16x16x16xbf16>, vector<16x16x16xbf16>, vector<16x16x16xbf16>, vector<16x16x16xbf16>, vector<16x16x16xbf16>, vector<16x16x16xbf16>, vector<16x16x16xbf16> -> vector<16x16x144xbf16>
    %28 = vector.shape_cast %27 : vector<16x16x144xbf16> to vector<256x144xbf16>
    %c0_17 = arith.constant 0 : index
    %c0_18 = arith.constant 0 : index
    %29 = vector.load %arg4[%c0_17, %c0_18] : memref<144x32xbf16, #tpu.memory_space<vmem>>, vector<144x32xbf16>
    %cst_19 = arith.constant dense<0.000000e+00> : vector<256x32xf32>
    %30 = tpu.matmul %28, %29, %cst_19 {dimension_numbers = #tpu.dot_dimension_numbers<[1], [0], [0], [1], [0, 0, 1, 1], [], []>} : vector<256x144xbf16>, vector<144x32xbf16>, vector<256x32xf32> -> vector<256x32xf32>
    %c0_20 = arith.constant 0 : index
    %c0_21 = arith.constant 0 : index
    %31 = vector.load %arg5[%c0_20, %c0_21] : memref<1x32xf32, #tpu.memory_space<vmem>>, vector<1x32xf32>
    %32 = vector.broadcast %31 : vector<1x32xf32> to vector<256x32xf32>
    %33 = arith.addf %30, %32 : vector<256x32xf32>
    %cst_22 = arith.constant 1.000000e-01 : f32
    %34 = vector.broadcast %cst_22 : f32 to vector<256x32xf32>
    %35 = arith.mulf %34, %33 : vector<256x32xf32>
    %36 = arith.maximumf %33, %35 : vector<256x32xf32>
    %37 = arith.addf %36, %2 : vector<256x32xf32>
    %38 = vector.shape_cast %37 : vector<256x32xf32> to vector<16x16x32xf32>
    %c0_23 = arith.constant 0 : index
    %c0_24 = arith.constant 0 : index
    %c0_25 = arith.constant 0 : index
    %c0_26 = arith.constant 0 : index
    %39 = vector.load %arg6[%c0_23, %c0_24, %c0_25, %c0_26] : memref<1x16x16x32xf32, #tpu.memory_space<vmem>>, vector<1x16x16x32xf32>
    %40 = vector.shape_cast %39 : vector<1x16x16x32xf32> to vector<16x16x32xf32>
    %41 = vector.shape_cast %38 : vector<16x16x32xf32> to vector<1x16x16x32xf32>
    tpu.vector_store %arg6[%c0_23, %c0_24, %c0_25, %c0_26], %41 {strides = array<i32>} : memref<1x16x16x32xf32, #tpu.memory_space<vmem>>, vector<1x16x16x32xf32>,
    return
  }
  func.func @transform_0(%arg0: i32) -> (i32, i32, i32, i32) {
    %c0_i32 = arith.constant 0 : i32
    %c0_i32_0 = arith.constant 0 : i32
    %c0_i32_1 = arith.constant 0 : i32
    %c0_i32_2 = arith.constant 0 : i32
    return %arg0, %c0_i32, %c0_i32_0, %c0_i32_1 : i32, i32, i32, i32
  }
  func.func @transform_1(%arg0: i32) -> (i32, i32) {
    %c0_i32 = arith.constant 0 : i32
    %c0_i32_0 = arith.constant 0 : i32
    %c0_i32_1 = arith.constant 0 : i32
    return %c0_i32, %c0_i32_0 : i32, i32
  }
  func.func @transform_2(%arg0: i32) -> (i32, i32) {
    %c0_i32 = arith.constant 0 : i32
    %c0_i32_0 = arith.constant 0 : i32
    %c0_i32_1 = arith.constant 0 : i32
    return %c0_i32, %c0_i32_0 : i32, i32
  }
  func.func @transform_3(%arg0: i32) -> (i32, i32) {
    %c0_i32 = arith.constant 0 : i32
    %c0_i32_0 = arith.constant 0 : i32
    %c0_i32_1 = arith.constant 0 : i32
    return %c0_i32, %c0_i32_0 : i32, i32
  }
  func.func @transform_4(%arg0: i32) -> (i32, i32) {
    %c0_i32 = arith.constant 0 : i32
    %c0_i32_0 = arith.constant 0 : i32
    %c0_i32_1 = arith.constant 0 : i32
    return %c0_i32, %c0_i32_0 : i32, i32
  }
  func.func @transform_5(%arg0: i32) -> (i32, i32, i32, i32) {
    %c0_i32 = arith.constant 0 : i32
    %c0_i32_0 = arith.constant 0 : i32
    %c0_i32_1 = arith.constant 0 : i32
    %c0_i32_2 = arith.constant 0 : i32
    return %arg0, %c0_i32, %c0_i32_0, %c0_i32_1 : i32, i32, i32, i32
  }
}

</mosaic_0001>

<llo_original>
// kernel: tpu_custom_call.1
$region0: #{tpu_custom_call.1}
  #allocation0 [shape = 'u32[]', space=smem, size = 0x4, offset = 0x4, fixed_abs, tag = 'smem constant byte address 0x4 - core index']
  #allocation1 [shape = 'u32[72,128]{1,0:T(1,128)}', space=vmem, size = 0x9000, scoped, tag = 'internal scratch']
  #allocation2 [shape = 'bf16[18,18,16]{2,1,0:T(8,128)(2,1)}', space=vmem, size = 0x1b000, scoped, tag = 'scratch operand']
  %s0 = inlined_call_operand.hbm [shape: f32[2,16,16,32], index: 0, kind: input, shape index: {}]
  %s1 = inlined_call_operand.vmem [shape: bf16[32,16], index: 1, kind: input, shape index: {}]
  %s2 = inlined_call_operand.vmem [shape: f32[1,16], index: 2, kind: input, shape index: {}]
  %s3 = inlined_call_operand.vmem [shape: bf16[144,32], index: 3, kind: input, shape index: {}]
  %s4 = inlined_call_operand.vmem [shape: f32[1,32], index: 4, kind: input, shape index: {}]
  %s5 = inlined_call_operand.hbm [shape: f32[2,16,16,32], index: 5, kind: output, shape index: {}]
  %s6 = sld [smem:[#allocation0]]
  $region57: #{tpu_custom_call.1} parent=0
    _
  %s8 = ssub.s32 1, %s6
  %s9 = scalar_select 0, %s8, %s6
  $region1: #{tpu_custom_call.1} parent=0
    #allocation3 [shape = 'u8[262144]{0}', space=vmem, size = 0x40000, scoped, tag = 'input window, operand 0']
    #allocation4 [shape = 's32[2]{0}', space=sflag, size = 0x8, scoped, tag = 'scoped memory for tpu_custom_call.1']
    #allocation5 [shape = 's32[2]{0}', space=sflag, size = 0x8, scoped, tag = 'scoped memory for tpu_custom_call.1']
    #allocation6 [shape = 'u8[262144]{0}', space=vmem, size = 0x40000, scoped, tag = 'output window, operand 0']
    %10 = vsyncpa [#allocation4], 0
    %s11 = scalar_lea.sflag [#allocation4], 1
    %12 = vsyncpa %s11, 0
    %13 = vsyncpa [#allocation5], 0
    %s14 = scalar_lea.sflag [#allocation5], 1
    %15 = vsyncpa %s14, 0
    loop: start=0, step=1, limit=4
    $region2: #{tpu_custom_call.1} parent=1 // loop_pre_header
      _
    $region3: #{tpu_custom_call.1} parent=1 // loop_header
      %s17 = sphi 0, %s21
      %p18 = scmp.ge.s32.totalorder %s17, 4
      %s27 = sphi 0, %s29
      %s30 = sphi 0, %s27
      %s31 = sphi 0, %s30
      %s47 = sphi 0, %s31
      %s51 = sphi 0, %s51
      %s53 = sphi 0, %s51
      %s54 = sphi 0, %s53
      %s68 = sphi 0, %s54
      %s72 = sphi 0, %s72
      %s74 = sphi 0, %s72
      %s75 = sphi 0, %s74
      %s89 = sphi 0, %s75
      %s93 = sphi 0, %s93
      %s95 = sphi 0, %s93
      %s96 = sphi 0, %s95
      %s110 = sphi 0, %s96
      %s114 = sphi 0, %s114
      %s116 = sphi 0, %s114
      %s117 = sphi 0, %s116
      %s131 = sphi 0, %s117
      %s137 = sphi 0, %s139
      %s140 = sphi 0, %s137
      %s141 = sphi 0, %s140
      %s157 = sphi 0, %s141
    $region4: #{tpu_custom_call.1} parent=1 // loop_header_branch
      %20 = sbr.rel (%p18) target = $region8
    $region5: #{tpu_custom_call.1} parent=1 // loop_body
      %s22 = ssub.s32 %s17, 1
      %s23 = ssub.s32 %s17, 2
      %s24 = sadd.s32 %s17, 1
      %s25 = ssub.s32 %s17, %s24
      %p26 = scmp.eq.s32.totalorder %s25, 0
      %s28 = sadd.s32 %s27, 1
      %s29 = scalar_select %p26, %s27, %s28
      %p32 = pneg %p26
      %p33 = scmp.eq.s32.totalorder %s17, 1
      %p34 = por %p32, %p33
      %p35 = scmp.ne.s32.totalorder %s27, %s30
      %p36 = scmp.eq.s32.totalorder %s17, 0
      %p37 = por %p35, %p36
      %p38 = scmp.ne.s32.totalorder %s27, %s30
      %p39 = scmp.eq.s32.totalorder %s22, 1
      %p40 = por %p38, %p39
      %p41 = scmp.ne.s32.totalorder %s30, %s31
      %p42 = scmp.eq.s32.totalorder %s22, 0
      %p43 = por %p41, %p42
      %p44 = scmp.ne.s32.totalorder %s30, %s31
      %p45 = scmp.eq.s32.totalorder %s23, 1
      %p46 = por %p44, %p45
      %p48 = scmp.ne.s32.totalorder %s31, %s47
      %p49 = scmp.eq.s32.totalorder %s23, 0
      %p50 = por %p48, %p49
      %s52 = sadd.s32 %s51, 1
      %p55 = scmp.eq.s32.totalorder %s17, 1
      %p56 = scmp.ne.s32.totalorder %s51, %s53
      %p57 = scmp.eq.s32.totalorder %s17, 0
      %p58 = por %p56, %p57
      %p59 = scmp.ne.s32.totalorder %s51, %s53
      %p60 = scmp.eq.s32.totalorder %s22, 1
      %p61 = por %p59, %p60
      %p62 = scmp.ne.s32.totalorder %s53, %s54
      %p63 = scmp.eq.s32.totalorder %s22, 0
      %p64 = por %p62, %p63
      %p65 = scmp.ne.s32.totalorder %s53, %s54
      %p66 = scmp.eq.s32.totalorder %s23, 1
      %p67 = por %p65, %p66
      %p69 = scmp.ne.s32.totalorder %s54, %s68
      %p70 = scmp.eq.s32.totalorder %s23, 0
      %p71 = por %p69, %p70
      %s73 = sadd.s32 %s72, 1
      %p76 = scmp.eq.s32.totalorder %s17, 1
      %p77 = scmp.ne.s32.totalorder %s72, %s74
      %p78 = scmp.eq.s32.totalorder %s17, 0
      %p79 = por %p77, %p78
      %p80 = scmp.ne.s32.totalorder %s72, %s74
      %p81 = scmp.eq.s32.totalorder %s22, 1
      %p82 = por %p80, %p81
      %p83 = scmp.ne.s32.totalorder %s74, %s75
      %p84 = scmp.eq.s32.totalorder %s22, 0
      %p85 = por %p83, %p84
      %p86 = scmp.ne.s32.totalorder %s74, %s75
      %p87 = scmp.eq.s32.totalorder %s23, 1
      %p88 = por %p86, %p87
      %p90 = scmp.ne.s32.totalorder %s75, %s89
      %p91 = scmp.eq.s32.totalorder %s23, 0
      %p92 = por %p90, %p91
      %s94 = sadd.s32 %s93, 1
      %p97 = scmp.eq.s32.totalorder %s17, 1
      %p98 = scmp.ne.s32.totalorder %s93, %s95
      %p99 = scmp.eq.s32.totalorder %s17, 0
      %p100 = por %p98, %p99
      %p101 = scmp.ne.s32.totalorder %s93, %s95
      %p102 = scmp.eq.s32.totalorder %s22, 1
      %p103 = por %p101, %p102
      %p104 = scmp.ne.s32.totalorder %s95, %s96
      %p105 = scmp.eq.s32.totalorder %s22, 0
      %p106 = por %p104, %p105
      %p107 = scmp.ne.s32.totalorder %s95, %s96
      %p108 = scmp.eq.s32.totalorder %s23, 1
      %p109 = por %p107, %p108
      %p111 = scmp.ne.s32.totalorder %s96, %s110
      %p112 = scmp.eq.s32.totalorder %s23, 0
      %p113 = por %p111, %p112
      %s115 = sadd.s32 %s114, 1
      %p118 = scmp.eq.s32.totalorder %s17, 1
      %p119 = scmp.ne.s32.totalorder %s114, %s116
      %p120 = scmp.eq.s32.totalorder %s17, 0
      %p121 = por %p119, %p120
      %p122 = scmp.ne.s32.totalorder %s114, %s116
      %p123 = scmp.eq.s32.totalorder %s22, 1
      %p124 = por %p122, %p123
      %p125 = scmp.ne.s32.totalorder %s116, %s117
      %p126 = scmp.eq.s32.totalorder %s22, 0
      %p127 = por %p125, %p126
      %p128 = scmp.ne.s32.totalorder %s116, %s117
      %p129 = scmp.eq.s32.totalorder %s23, 1
      %p130 = por %p128, %p129
      %p132 = scmp.ne.s32.totalorder %s117, %s131
      %p133 = scmp.eq.s32.totalorder %s23, 0
      %p134 = por %p132, %p133
      %s135 = ssub.s32 %s17, %s24
      %p136 = scmp.eq.s32.totalorder %s135, 0
      %s138 = sadd.s32 %s137, 1
      %s139 = scalar_select %p136, %s137, %s138
      %p142 = pneg %p136
      %p143 = scmp.eq.s32.totalorder %s17, 1
      %p144 = por %p142, %p143
      %p145 = scmp.ne.s32.totalorder %s137, %s140
      %p146 = scmp.eq.s32.totalorder %s17, 0
      %p147 = por %p145, %p146
      %p148 = scmp.ne.s32.totalorder %s137, %s140
      %p149 = scmp.eq.s32.totalorder %s22, 1
      %p150 = por %p148, %p149
      %p151 = scmp.ne.s32.totalorder %s140, %s141
      %p152 = scmp.eq.s32.totalorder %s22, 0
      %p153 = por %p151, %p152
      %p154 = scmp.ne.s32.totalorder %s140, %s141
      %p155 = scmp.eq.s32.totalorder %s23, 1
      %p156 = por %p154, %p155
      %p158 = scmp.ne.s32.totalorder %s141, %s157
      %p159 = scmp.eq.s32.totalorder %s23, 0
      %p160 = por %p158, %p159
      %p161 = scmp.le.s32.totalorder 1, %s17
      %p162 = scmp.lt.s32.totalorder %s17, 3
      %p163 = pnand %p161, %p162
      %p164 = pneg %p163
      // Predicated region
      $region9: #{tpu_custom_call.1} parent=5 // pred_check
        _
      $region10: #{tpu_custom_call.1} parent=5 // pred_check_branch
        %166 = sbr.rel (%p163) target = $region12
      $region11: #{tpu_custom_call.1} parent=5 // pred_region
        %s167 = ssub.s32 %s17, 1
        // Predicated region
        $region13: #{tpu_custom_call.1} parent=11 // pred_check
          %p168 = pneg %p64
        $region14: #{tpu_custom_call.1} parent=11 // pred_check_branch
          %170 = sbr.rel (%p168) target = $region16
        $region15: #{tpu_custom_call.1} parent=11 // pred_region
          _
        $region16: #{tpu_custom_call.1} parent=11 // pred_fallthru
          _
        // Predicated region
        $region17: #{tpu_custom_call.1} parent=11 // pred_check
          %p171 = pneg %p85
        $region18: #{tpu_custom_call.1} parent=11 // pred_check_branch
          %173 = sbr.rel (%p171) target = $region20
        $region19: #{tpu_custom_call.1} parent=11 // pred_region
          _
        $region20: #{tpu_custom_call.1} parent=11 // pred_fallthru
          _
        // Predicated region
        $region21: #{tpu_custom_call.1} parent=11 // pred_check
          %p174 = pneg %p106
        $region22: #{tpu_custom_call.1} parent=11 // pred_check_branch
          %176 = sbr.rel (%p174) target = $region24
        $region23: #{tpu_custom_call.1} parent=11 // pred_region
          _
        $region24: #{tpu_custom_call.1} parent=11 // pred_fallthru
          _
        // Predicated region
        $region25: #{tpu_custom_call.1} parent=11 // pred_check
          %p177 = pneg %p127
        $region26: #{tpu_custom_call.1} parent=11 // pred_check_branch
          %179 = sbr.rel (%p177) target = $region28
        $region27: #{tpu_custom_call.1} parent=11 // pred_region
          _
        $region28: #{tpu_custom_call.1} parent=11 // pred_fallthru
          _
      $region12: #{tpu_custom_call.1} parent=5 // pred_fallthru
        _
      %p180 = scmp.lt.s32.totalorder %s17, 2
      // Predicated region
      $region29: #{tpu_custom_call.1} parent=5 // pred_check
        %p181 = pneg %p180
      $region30: #{tpu_custom_call.1} parent=5 // pred_check_branch
        %183 = sbr.rel (%p181) target = $region32
      $region31: #{tpu_custom_call.1} parent=5 // pred_region
        // Predicated region
        $region33: #{tpu_custom_call.1} parent=31 // pred_check
          %p184 = pneg %p37
        $region34: #{tpu_custom_call.1} parent=31 // pred_check_branch
          %186 = sbr.rel (%p184) target = $region36
        $region35: #{tpu_custom_call.1} parent=31 // pred_region
          %s187 = sand.u32 %s27, 1
          %s188 = scalar_lea.sflag [#allocation4], %s187
          %s189 = sand.u32 %s27, 1
          %s190 = smul.addr %s189, 256
          %s191 = scalar_lea.vmem [#allocation3], %s190
          %193 = vsyncadd %s188, 0
          %s194 = smul.addr %s17, 32
          %s195 = smul.addr %s194, 8
          %s196 = scalar_lea.hbm %s0, %s195
          %s197 = sshll.u32 %s196, 4
          %s198 = int_to_ptr.hbm [resolvable:$true] %s197
          %s199 = sshll.u32 %s191, 4
          %s200 = int_to_ptr.vmem [resolvable:$true] %s199
          %205 = dma.hbm_to_vmem [thread:$0]  %s198, 4096, %s200, %s188, 128, 128, 8
        $region36: #{tpu_custom_call.1} parent=31 // pred_fallthru
          _
      $region32: #{tpu_custom_call.1} parent=5 // pred_fallthru
        _
      %p206 = scmp.le.s32.totalorder 1, %s17
      %p207 = scmp.lt.s32.totalorder %s17, 3
      %p208 = pnand %p206, %p207
      %p209 = pneg %p208
      // Predicated region
      $region37: #{tpu_custom_call.1} parent=5 // pred_check
        _
      $region38: #{tpu_custom_call.1} parent=5 // pred_check_branch
        %211 = sbr.rel (%p208) target = $region40
      $region39: #{tpu_custom_call.1} parent=5 // pred_region
        %s212 = ssub.s32 %s17, 1
        %s213 = sand.u32 %s30, 1
        %s214 = scalar_lea.sflag [#allocation4], %s213
        %s215 = sand.u32 %s30, 1
        %s216 = smul.addr %s215, 256
        %s217 = scalar_lea.vmem [#allocation3], %s216
        // Predicated region
        $region41: #{tpu_custom_call.1} parent=39 // pred_check
          %p218 = pneg %p43
        $region42: #{tpu_custom_call.1} parent=39 // pred_check_branch
          %220 = sbr.rel (%p218) target = $region44
        $region43: #{tpu_custom_call.1} parent=39 // pred_region
          %222 = dma.done %s214, 4096
        $region44: #{tpu_custom_call.1} parent=39 // pred_fallthru
          _
        %s223 = sand.u32 %s30, 1
        %s224 = scalar_lea.sflag [#allocation4], %s223
        %s225 = sand.u32 %s30, 1
        %s226 = smul.addr %s225, 256
        %s227 = scalar_lea.vmem [#allocation3], %s226
        %p228 = pneg %p43
        %p229 = pneg %p40
        %p230 = pneg %p64
        %p231 = pneg %p61
        %p232 = pneg %p85
        %p233 = pneg %p82
        %p234 = pneg %p106
        %p235 = pneg %p103
        %p236 = pneg %p127
        %p237 = pneg %p124
        %p238 = pneg %p153
        %p239 = pneg %p150
        %s240 = sand.u32 %s140, 1
        %s241 = scalar_lea.sflag [#allocation5], %s240
        %s242 = sand.u32 %s140, 1
        %s243 = smul.addr %s242, 256
        %s244 = scalar_lea.vmem [#allocation6], %s243
        %v246 = vld [vmem:[%s217] sm:$0xff]
        %v247 = vld [vmem:[%s217 + $0x8] sm:$0xff]
        %v248 = vld [vmem:[%s217 + $0x10] sm:$0xff]
        %v249 = vld [vmem:[%s217 + $0x18] sm:$0xff]
        %v250 = vld [vmem:[%s217 + $0x20] sm:$0xff]
        %v251 = vld [vmem:[%s217 + $0x28] sm:$0xff]
        %v252 = vld [vmem:[%s217 + $0x30] sm:$0xff]
        %v253 = vld [vmem:[%s217 + $0x38] sm:$0xff]
        %v254 = vld [vmem:[%s217 + $0x40] sm:$0xff]
        %v255 = vld [vmem:[%s217 + $0x48] sm:$0xff]
        %v256 = vld [vmem:[%s217 + $0x50] sm:$0xff]
        %v257 = vld [vmem:[%s217 + $0x58] sm:$0xff]
        %v258 = vld [vmem:[%s217 + $0x60] sm:$0xff]
        %v259 = vld [vmem:[%s217 + $0x68] sm:$0xff]
        %v260 = vld [vmem:[%s217 + $0x70] sm:$0xff]
        %v261 = vld [vmem:[%s217 + $0x78] sm:$0xff]
        %v262 = vld [vmem:[%s217 + $0x80] sm:$0xff]
        %v263 = vld [vmem:[%s217 + $0x88] sm:$0xff]
        %v264 = vld [vmem:[%s217 + $0x90] sm:$0xff]
        %v265 = vld [vmem:[%s217 + $0x98] sm:$0xff]
        %v266 = vld [vmem:[%s217 + $0xa0] sm:$0xff]
        %v267 = vld [vmem:[%s217 + $0xa8] sm:$0xff]
        %v268 = vld [vmem:[%s217 + $0xb0] sm:$0xff]
        %v269 = vld [vmem:[%s217 + $0xb8] sm:$0xff]
        %v270 = vld [vmem:[%s217 + $0xc0] sm:$0xff]
        %v271 = vld [vmem:[%s217 + $0xc8] sm:$0xff]
        %v272 = vld [vmem:[%s217 + $0xd0] sm:$0xff]
        %v273 = vld [vmem:[%s217 + $0xd8] sm:$0xff]
        %v274 = vld [vmem:[%s217 + $0xe0] sm:$0xff]
        %v275 = vld [vmem:[%s217 + $0xe8] sm:$0xff]
        %v276 = vld [vmem:[%s217 + $0xf0] sm:$0xff]
        %v277 = vld [vmem:[%s217 + $0xf8] sm:$0xff]
        %v278 = vpack.c.bf16 %v247, %v246
        %v279 = vpack.c.bf16 %v249, %v248
        %v280 = vpack.c.bf16 %v251, %v250
        %v281 = vpack.c.bf16 %v253, %v252
        %v282 = vpack.c.bf16 %v255, %v254
        %v283 = vpack.c.bf16 %v257, %v256
        %v284 = vpack.c.bf16 %v259, %v258
        %v285 = vpack.c.bf16 %v261, %v260
        %v286 = vpack.c.bf16 %v263, %v262
        %v287 = vpack.c.bf16 %v265, %v264
        %v288 = vpack.c.bf16 %v267, %v266
        %v289 = vpack.c.bf16 %v269, %v268
        %v290 = vpack.c.bf16 %v271, %v270
        %v291 = vpack.c.bf16 %v273, %v272
        %v292 = vpack.c.bf16 %v275, %v274
        %v293 = vpack.c.bf16 %v277, %v276
        %v294 = vld [vmem:[%s1] sm:$0xf]
        %v295 = vld [vmem:[%s1 + $0x4] sm:$0xf]
        %v296 = vld [vmem:[%s1 + $0x8] sm:$0xf]
        %v297 = vld [vmem:[%s1 + $0xc] sm:$0xf]
        %v298 = vld [vmem:[%s2] sm:$0x1]
        %v300 = vperm.slane %v298, 0
        %v306 = vunpack.c.l.b16 %v294
        %v307 = vunpack.c.l.b16 %v295
        %v308 = vunpack.c.l.b16 %v296
        %v309 = vunpack.c.l.b16 %v297
        %v310 = vpack.c.b16 %v307, %v306
        %v311 = vpack.c.b16 %v309, %v308
        %vm314 = vcmask 261120
        %v316 = vsel %vm314, %v278, 0
        %v319 = vsel %vm314, %v279, 0
        %v322 = vsel %vm314, %v280, 0
        %v325 = vsel %vm314, %v281, 0
        %v328 = vsel %vm314, %v282, 0
        %v331 = vsel %vm314, %v283, 0
        %v334 = vsel %vm314, %v284, 0
        %v337 = vsel %vm314, %v285, 0
        %v340 = vsel %vm314, %v286, 0
        %v343 = vsel %vm314, %v287, 0
        %v346 = vsel %vm314, %v288, 0
        %v349 = vsel %vm314, %v289, 0
        %v352 = vsel %vm314, %v290, 0
        %v355 = vsel %vm314, %v291, 0
        %v358 = vsel %vm314, %v292, 0
        %v361 = vsel %vm314, %v293, 0
        %363 = vmatpush.bf16.msra.mxu0 0
        %364 = vmatpush.bf16.msra.mxu0 0
        %365 = vmatpush.bf16.msra.mxu0 0
        %366 = vmatpush.bf16.msra.mxu0 0
        %367 = vmatpush.bf16.msra.mxu0 0
        %368 = vmatpush.bf16.msra.mxu0 0
        %369 = vmatpush.bf16.msra.mxu0 %v311
        %370 = vmatpush.bf16.msra.mxu0 %v310
        %371 = vmatmul.bf16.gmra.mxu0 %v316
        %v372 = vpop.f32.mrf.mxu0
        %v373 = vadd.f32 %v300, %v372
        %v374 = vpop.f32.mrf.mxu0
        %v375 = vadd.f32 %v300, %v374
        %376 = vmatmul.bf16.gmra.mxu0 %v319
        %v377 = vpop.f32.mrf.mxu0
        %v378 = vadd.f32 %v300, %v377
        %v379 = vpop.f32.mrf.mxu0
        %v380 = vadd.f32 %v300, %v379
        %381 = vmatmul.bf16.gmra.mxu0 %v322
        %v382 = vpop.f32.mrf.mxu0
        %v383 = vadd.f32 %v300, %v382
        %v384 = vpop.f32.mrf.mxu0
        %v385 = vadd.f32 %v300, %v384
        %386 = vmatmul.bf16.gmra.mxu0 %v325
        %v387 = vpop.f32.mrf.mxu0
        %v388 = vadd.f32 %v300, %v387
        %v389 = vpop.f32.mrf.mxu0
        %v390 = vadd.f32 %v300, %v389
        %391 = vmatmul.bf16.gmra.mxu0 %v328
        %v392 = vpop.f32.mrf.mxu0
        %v393 = vadd.f32 %v300, %v392
        %v394 = vpop.f32.mrf.mxu0
        %v395 = vadd.f32 %v300, %v394
        %396 = vmatmul.bf16.gmra.mxu0 %v331
        %v397 = vpop.f32.mrf.mxu0
        %v398 = vadd.f32 %v300, %v397
        %v399 = vpop.f32.mrf.mxu0
        %v400 = vadd.f32 %v300, %v399
        %401 = vmatmul.bf16.gmra.mxu0 %v334
        %v402 = vpop.f32.mrf.mxu0
        %v403 = vadd.f32 %v300, %v402
        %v404 = vpop.f32.mrf.mxu0
        %v405 = vadd.f32 %v300, %v404
        %406 = vmatmul.bf16.gmra.mxu0 %v337
        %v407 = vpop.f32.mrf.mxu0
        %v408 = vadd.f32 %v300, %v407
        %v409 = vpop.f32.mrf.mxu0
        %v410 = vadd.f32 %v300, %v409
        %411 = vmatmul.bf16.gmra.mxu0 %v340
        %v412 = vpop.f32.mrf.mxu0
        %v413 = vadd.f32 %v300, %v412
        %v414 = vpop.f32.mrf.mxu0
        %v415 = vadd.f32 %v300, %v414
        %416 = vmatmul.bf16.gmra.mxu0 %v343
        %v417 = vpop.f32.mrf.mxu0
        %v418 = vadd.f32 %v300, %v417
        %v419 = vpop.f32.mrf.mxu0
        %v420 = vadd.f32 %v300, %v419
        %421 = vmatmul.bf16.gmra.mxu0 %v346
        %v422 = vpop.f32.mrf.mxu0
        %v423 = vadd.f32 %v300, %v422
        %v424 = vpop.f32.mrf.mxu0
        %v425 = vadd.f32 %v300, %v424
        %426 = vmatmul.bf16.gmra.mxu0 %v349
        %v427 = vpop.f32.mrf.mxu0
        %v428 = vadd.f32 %v300, %v427
        %v429 = vpop.f32.mrf.mxu0
        %v430 = vadd.f32 %v300, %v429
        %431 = vmatmul.bf16.gmra.mxu0 %v352
        %v432 = vpop.f32.mrf.mxu0
        %v433 = vadd.f32 %v300, %v432
        %v434 = vpop.f32.mrf.mxu0
        %v435 = vadd.f32 %v300, %v434
        %436 = vmatmul.bf16.gmra.mxu0 %v355
        %v437 = vpop.f32.mrf.mxu0
        %v438 = vadd.f32 %v300, %v437
        %v439 = vpop.f32.mrf.mxu0
        %v440 = vadd.f32 %v300, %v439
        %441 = vmatmul.bf16.gmra.mxu0 %v358
        %v442 = vpop.f32.mrf.mxu0
        %v443 = vadd.f32 %v300, %v442
        %v444 = vpop.f32.mrf.mxu0
        %v445 = vadd.f32 %v300, %v444
        %446 = vmatmul.bf16.gmra.mxu0 %v361
        %v447 = vpop.f32.mrf.mxu0
        %v448 = vadd.f32 %v300, %v447
        %v449 = vpop.f32.mrf.mxu0
        %v450 = vadd.f32 %v300, %v449
        %451 = vdwg.mxu0
        %v452 = vmul.f32 %v373, 0.1
        %v453 = vmul.f32 %v375, 0.1
        %v454 = vmul.f32 %v378, 0.1
        %v455 = vmul.f32 %v380, 0.1
        %v456 = vmul.f32 %v383, 0.1
        %v457 = vmul.f32 %v385, 0.1
        %v458 = vmul.f32 %v388, 0.1
        %v459 = vmul.f32 %v390, 0.1
        %v460 = vmul.f32 %v393, 0.1
        %v461 = vmul.f32 %v395, 0.1
        %v462 = vmul.f32 %v398, 0.1
        %v463 = vmul.f32 %v400, 0.1
        %v464 = vmul.f32 %v403, 0.1
        %v465 = vmul.f32 %v405, 0.1
        %v466 = vmul.f32 %v408, 0.1
        %v467 = vmul.f32 %v410, 0.1
        %v468 = vmul.f32 %v413, 0.1
        %v469 = vmul.f32 %v415, 0.1
        %v470 = vmul.f32 %v418, 0.1
        %v471 = vmul.f32 %v420, 0.1
        %v472 = vmul.f32 %v423, 0.1
        %v473 = vmul.f32 %v425, 0.1
        %v474 = vmul.f32 %v428, 0.1
        %v475 = vmul.f32 %v430, 0.1
        %v476 = vmul.f32 %v433, 0.1
        %v477 = vmul.f32 %v435, 0.1
        %v478 = vmul.f32 %v438, 0.1
        %v479 = vmul.f32 %v440, 0.1
        %v480 = vmul.f32 %v443, 0.1
        %v481 = vmul.f32 %v445, 0.1
        %v482 = vmul.f32 %v448, 0.1
        %v483 = vmul.f32 %v450, 0.1
        %v484 = vmax.f32 %v373, %v452
        %v485 = vmax.f32 %v375, %v453
        %v486 = vmax.f32 %v378, %v454
        %v487 = vmax.f32 %v380, %v455
        %v488 = vmax.f32 %v383, %v456
        %v489 = vmax.f32 %v385, %v457
        %v490 = vmax.f32 %v388, %v458
        %v491 = vmax.f32 %v390, %v459
        %v492 = vmax.f32 %v393, %v460
        %v493 = vmax.f32 %v395, %v461
        %v494 = vmax.f32 %v398, %v462
        %v495 = vmax.f32 %v400, %v463
        %v496 = vmax.f32 %v403, %v464
        %v497 = vmax.f32 %v405, %v465
        %v498 = vmax.f32 %v408, %v466
        %v499 = vmax.f32 %v410, %v467
        %v500 = vmax.f32 %v413, %v468
        %v501 = vmax.f32 %v415, %v469
        %v502 = vmax.f32 %v418, %v470
        %v503 = vmax.f32 %v420, %v471
        %v504 = vmax.f32 %v423, %v472
        %v505 = vmax.f32 %v425, %v473
        %v506 = vmax.f32 %v428, %v474
        %v507 = vmax.f32 %v430, %v475
        %v508 = vmax.f32 %v433, %v476
        %v509 = vmax.f32 %v435, %v477
        %v510 = vmax.f32 %v438, %v478
        %v511 = vmax.f32 %v440, %v479
        %v512 = vmax.f32 %v443, %v480
        %v513 = vmax.f32 %v445, %v481
        %v514 = vmax.f32 %v448, %v482
        %v515 = vmax.f32 %v450, %v483
        %vm516 = vcmask 125952
        %517 = vst.msk [vmem:[#allocation2] sm:$0xf] %vm516, 0
        %518 = vst.msk [vmem:[#allocation2 + $0x4] sm:$0xf] %vm516, 0
        %vm519 = vcmask 122880
        %520 = vst.msk [vmem:[#allocation2 + $0x8] sm:$0x1] %vm519, 0
        %521 = vst.msk [vmem:[#allocation2 + $0xc] sm:$0xf] %vm516, 0
        %522 = vst.msk [vmem:[#allocation2 + $0x10] sm:$0xf] %vm516, 0
        %523 = vst.msk [vmem:[#allocation2 + $0x14] sm:$0x1] %vm519, 0
        %524 = vst.msk [vmem:[#allocation2 + $0x18] sm:$0xf] %vm516, 0
        %525 = vst.msk [vmem:[#allocation2 + $0x1c] sm:$0xf] %vm516, 0
        %526 = vst.msk [vmem:[#allocation2 + $0x20] sm:$0x1] %vm519, 0
        %527 = vst.msk [vmem:[#allocation2 + $0x24] sm:$0xf] %vm516, 0
        %528 = vst.msk [vmem:[#allocation2 + $0x28] sm:$0xf] %vm516, 0
        %529 = vst.msk [vmem:[#allocation2 + $0x2c] sm:$0x1] %vm519, 0
        %530 = vst.msk [vmem:[#allocation2 + $0x30] sm:$0xf] %vm516, 0
        %531 = vst.msk [vmem:[#allocation2 + $0x34] sm:$0xf] %vm516, 0
        %532 = vst.msk [vmem:[#allocation2 + $0x38] sm:$0x1] %vm519, 0
        %533 = vst.msk [vmem:[#allocation2 + $0x3c] sm:$0xf] %vm516, 0
        %534 = vst.msk [vmem:[#allocation2 + $0x40] sm:$0xf] %vm516, 0
        %535 = vst.msk [vmem:[#allocation2 + $0x44] sm:$0x1] %vm519, 0
        %536 = vst.msk [vmem:[#allocation2 + $0x48] sm:$0xf] %vm516, 0
        %537 = vst.msk [vmem:[#allocation2 + $0x4c] sm:$0xf] %vm516, 0
        %538 = vst.msk [vmem:[#allocation2 + $0x50] sm:$0x1] %vm519, 0
        %539 = vst.msk [vmem:[#allocation2 + $0x54] sm:$0xf] %vm516, 0
        %540 = vst.msk [vmem:[#allocation2 + $0x58] sm:$0xf] %vm516, 0
        %541 = vst.msk [vmem:[#allocation2 + $0x5c] sm:$0x1] %vm519, 0
        %542 = vst.msk [vmem:[#allocation2 + $0x60] sm:$0xf] %vm516, 0
        %543 = vst.msk [vmem:[#allocation2 + $0x64] sm:$0xf] %vm516, 0
        %544 = vst.msk [vmem:[#allocation2 + $0x68] sm:$0x1] %vm519, 0
        %545 = vst.msk [vmem:[#allocation2 + $0x6c] sm:$0xf] %vm516, 0
        %546 = vst.msk [vmem:[#allocation2 + $0x70] sm:$0xf] %vm516, 0
        %547 = vst.msk [vmem:[#allocation2 + $0x74] sm:$0x1] %vm519, 0
        %548 = vst.msk [vmem:[#allocation2 + $0x78] sm:$0xf] %vm516, 0
        %549 = vst.msk [vmem:[#allocation2 + $0x7c] sm:$0xf] %vm516, 0
        %550 = vst.msk [vmem:[#allocation2 + $0x80] sm:$0x1] %vm519, 0
        %551 = vst.msk [vmem:[#allocation2 + $0x84] sm:$0xf] %vm516, 0
        %552 = vst.msk [vmem:[#allocation2 + $0x88] sm:$0xf] %vm516, 0
        %553 = vst.msk [vmem:[#allocation2 + $0x8c] sm:$0x1] %vm519, 0
        %554 = vst.msk [vmem:[#allocation2 + $0x90] sm:$0xf] %vm516, 0
        %555 = vst.msk [vmem:[#allocation2 + $0x94] sm:$0xf] %vm516, 0
        %556 = vst.msk [vmem:[#allocation2 + $0x98] sm:$0x1] %vm519, 0
        %557 = vst.msk [vmem:[#allocation2 + $0x9c] sm:$0xf] %vm516, 0
        %558 = vst.msk [vmem:[#allocation2 + $0xa0] sm:$0xf] %vm516, 0
        %559 = vst.msk [vmem:[#allocation2 + $0xa4] sm:$0x1] %vm519, 0
        %560 = vst.msk [vmem:[#allocation2 + $0xa8] sm:$0xf] %vm516, 0
        %561 = vst.msk [vmem:[#allocation2 + $0xac] sm:$0xf] %vm516, 0
        %562 = vst.msk [vmem:[#allocation2 + $0xb0] sm:$0x1] %vm519, 0
        %563 = vst.msk [vmem:[#allocation2 + $0xb4] sm:$0xf] %vm516, 0
        %564 = vst.msk [vmem:[#allocation2 + $0xb8] sm:$0xf] %vm516, 0
        %565 = vst.msk [vmem:[#allocation2 + $0xbc] sm:$0x1] %vm519, 0
        %566 = vst.msk [vmem:[#allocation2 + $0xc0] sm:$0xf] %vm516, 0
        %567 = vst.msk [vmem:[#allocation2 + $0xc4] sm:$0xf] %vm516, 0
        %568 = vst.msk [vmem:[#allocation2 + $0xc8] sm:$0x1] %vm519, 0
        %569 = vst.msk [vmem:[#allocation2 + $0xcc] sm:$0xf] %vm516, 0
        %570 = vst.msk [vmem:[#allocation2 + $0xd0] sm:$0xf] %vm516, 0
        %571 = vst.msk [vmem:[#allocation2 + $0xd4] sm:$0x1] %vm519, 0
        %v572 = vpack.c.bf16 %v484, %v484
        %v573 = vpack.c.bf16 %v485, %v485
        %v574 = vpack.c.bf16 %v486, %v486
        %v575 = vpack.c.bf16 %v487, %v487
        %v576 = vpack.c.bf16 %v488, %v488
        %v577 = vpack.c.bf16 %v489, %v489
        %v578 = vpack.c.bf16 %v490, %v490
        %v579 = vpack.c.bf16 %v491, %v491
        %v580 = vpack.c.bf16 %v492, %v492
        %v581 = vpack.c.bf16 %v493, %v493
        %v582 = vpack.c.bf16 %v494, %v494
        %v583 = vpack.c.bf16 %v495, %v495
        %v584 = vpack.c.bf16 %v496, %v496
        %v585 = vpack.c.bf16 %v497, %v497
        %v586 = vpack.c.bf16 %v498, %v498
        %v587 = vpack.c.bf16 %v499, %v499
        %v588 = vpack.c.bf16 %v500, %v500
        %v589 = vpack.c.bf16 %v501, %v501
        %v590 = vpack.c.bf16 %v502, %v502
        %v591 = vpack.c.bf16 %v503, %v503
        %v592 = vpack.c.bf16 %v504, %v504
        %v593 = vpack.c.bf16 %v505, %v505
        %v594 = vpack.c.bf16 %v506, %v506
        %v595 = vpack.c.bf16 %v507, %v507
        %v596 = vpack.c.bf16 %v508, %v508
        %v597 = vpack.c.bf16 %v509, %v509
        %v598 = vpack.c.bf16 %v510, %v510
        %v599 = vpack.c.bf16 %v511, %v511
        %v600 = vpack.c.bf16 %v512, %v512
        %v601 = vpack.c.bf16 %v513, %v513
        %v602 = vpack.c.bf16 %v514, %v514
        %v603 = vpack.c.bf16 %v515, %v515
        %vm604 = vsmask.f32 256
        %vm605 = vsmask.f32 4368
        %vm606 = vmor %vm604, %vm605
        %v608 = vshrl.u32 %v572, 16
        %v610 = vrot.slane %v608, 7
        %v611 = vshll.u32 %v572, 16
        %v613 = vor.u32 %v610, %v611
        %v614 = vrot.slane %v610, 4
        %v616 = vshrl.u32 %v573, 16
        %v618 = vrot.slane %v616, 7
        %v619 = vshll.u32 %v573, 16
        %v621 = vor.u32 %v618, %v619
        %v622 = vsel %vm606, %v614, %v621
        %v623 = vrot.slane %v618, 4
        %v625 = vshrl.u32 %v574, 16
        %v627 = vrot.slane %v625, 7
        %v628 = vshll.u32 %v574, 16
        %v630 = vor.u32 %v627, %v628
        %v631 = vrot.slane %v627, 4
        %v633 = vshrl.u32 %v575, 16
        %v635 = vrot.slane %v633, 7
        %v636 = vshll.u32 %v575, 16
        %v638 = vor.u32 %v635, %v636
        %v639 = vsel %vm606, %v631, %v638
        %v640 = vrot.slane %v635, 4
        %v642 = vshrl.u32 %v576, 16
        %v644 = vrot.slane %v642, 7
        %v645 = vshll.u32 %v576, 16
        %v647 = vor.u32 %v644, %v645
        %v648 = vrot.slane %v644, 4
        %v650 = vshrl.u32 %v577, 16
        %v652 = vrot.slane %v650, 7
        %v653 = vshll.u32 %v577, 16
        %v655 = vor.u32 %v652, %v653
        %v656 = vsel %vm606, %v648, %v655
        %v657 = vrot.slane %v652, 4
        %v659 = vshrl.u32 %v578, 16
        %v661 = vrot.slane %v659, 7
        %v662 = vshll.u32 %v578, 16
        %v664 = vor.u32 %v661, %v662
        %v665 = vrot.slane %v661, 4
        %v667 = vshrl.u32 %v579, 16
        %v669 = vrot.slane %v667, 7
        %v670 = vshll.u32 %v579, 16
        %v672 = vor.u32 %v669, %v670
        %v673 = vsel %vm606, %v665, %v672
        %v674 = vrot.slane %v669, 4
        %v676 = vshrl.u32 %v580, 16
        %v678 = vrot.slane %v676, 7
        %v679 = vshll.u32 %v580, 16
        %v681 = vor.u32 %v678, %v679
        %v682 = vrot.slane %v678, 4
        %v684 = vshrl.u32 %v581, 16
        %v686 = vrot.slane %v684, 7
        %v687 = vshll.u32 %v581, 16
        %v689 = vor.u32 %v686, %v687
        %v690 = vsel %vm606, %v682, %v689
        %v691 = vrot.slane %v686, 4
        %v693 = vshrl.u32 %v582, 16
        %v695 = vrot.slane %v693, 7
        %v696 = vshll.u32 %v582, 16
        %v698 = vor.u32 %v695, %v696
        %v699 = vrot.slane %v695, 4
        %v701 = vshrl.u32 %v583, 16
        %v703 = vrot.slane %v701, 7
        %v704 = vshll.u32 %v583, 16
        %v706 = vor.u32 %v703, %v704
        %v707 = vsel %vm606, %v699, %v706
        %v708 = vrot.slane %v703, 4
        %v710 = vshrl.u32 %v584, 16
        %v712 = vrot.slane %v710, 7
        %v713 = vshll.u32 %v584, 16
        %v715 = vor.u32 %v712, %v713
        %v716 = vrot.slane %v712, 4
        %v718 = vshrl.u32 %v585, 16
        %v720 = vrot.slane %v718, 7
        %v721 = vshll.u32 %v585, 16
        %v723 = vor.u32 %v720, %v721
        %v724 = vsel %vm606, %v716, %v723
        %v725 = vrot.slane %v720, 4
        %v727 = vshrl.u32 %v586, 16
        %v729 = vrot.slane %v727, 7
        %v730 = vshll.u32 %v586, 16
        %v732 = vor.u32 %v729, %v730
        %v733 = vrot.slane %v729, 4
        %v735 = vshrl.u32 %v587, 16
        %v737 = vrot.slane %v735, 7
        %v738 = vshll.u32 %v587, 16
        %v740 = vor.u32 %v737, %v738
        %v741 = vsel %vm606, %v733, %v740
        %v742 = vrot.slane %v737, 4
        %v744 = vshrl.u32 %v588, 16
        %v746 = vrot.slane %v744, 7
        %v747 = vshll.u32 %v588, 16
        %v749 = vor.u32 %v746, %v747
        %v750 = vrot.slane %v746, 4
        %v752 = vshrl.u32 %v589, 16
        %v754 = vrot.slane %v752, 7
        %v755 = vshll.u32 %v589, 16
        %v757 = vor.u32 %v754, %v755
        %v758 = vsel %vm606, %v750, %v757
        %v759 = vrot.slane %v754, 4
        %v761 = vshrl.u32 %v590, 16
        %v763 = vrot.slane %v761, 7
        %v764 = vshll.u32 %v590, 16
        %v766 = vor.u32 %v763, %v764
        %v767 = vrot.slane %v763, 4
        %v769 = vshrl.u32 %v591, 16
        %v771 = vrot.slane %v769, 7
        %v772 = vshll.u32 %v591, 16
        %v774 = vor.u32 %v771, %v772
        %v775 = vsel %vm606, %v767, %v774
        %v776 = vrot.slane %v771, 4
        %v778 = vshrl.u32 %v592, 16
        %v780 = vrot.slane %v778, 7
        %v781 = vshll.u32 %v592, 16
        %v783 = vor.u32 %v780, %v781
        %v784 = vrot.slane %v780, 4
        %v786 = vshrl.u32 %v593, 16
        %v788 = vrot.slane %v786, 7
        %v789 = vshll.u32 %v593, 16
        %v791 = vor.u32 %v788, %v789
        %v792 = vsel %vm606, %v784, %v791
        %v793 = vrot.slane %v788, 4
        %v795 = vshrl.u32 %v594, 16
        %v797 = vrot.slane %v795, 7
        %v798 = vshll.u32 %v594, 16
        %v800 = vor.u32 %v797, %v798
        %v801 = vrot.slane %v797, 4
        %v803 = vshrl.u32 %v595, 16
        %v805 = vrot.slane %v803, 7
        %v806 = vshll.u32 %v595, 16
        %v808 = vor.u32 %v805, %v806
        %v809 = vsel %vm606, %v801, %v808
        %v810 = vrot.slane %v805, 4
        %v812 = vshrl.u32 %v596, 16
        %v814 = vrot.slane %v812, 7
        %v815 = vshll.u32 %v596, 16
        %v817 = vor.u32 %v814, %v815
        %v818 = vrot.slane %v814, 4
        %v820 = vshrl.u32 %v597, 16
        %v822 = vrot.slane %v820, 7
        %v823 = vshll.u32 %v597, 16
        %v825 = vor.u32 %v822, %v823
        %v826 = vsel %vm606, %v818, %v825
        %v827 = vrot.slane %v822, 4
        %v829 = vshrl.u32 %v598, 16
        %v831 = vrot.slane %v829, 7
        %v832 = vshll.u32 %v598, 16
        %v834 = vor.u32 %v831, %v832
        %v835 = vrot.slane %v831, 4
        %v837 = vshrl.u32 %v599, 16
        %v839 = vrot.slane %v837, 7
        %v840 = vshll.u32 %v599, 16
        %v842 = vor.u32 %v839, %v840
        %v843 = vsel %vm606, %v835, %v842
        %v844 = vrot.slane %v839, 4
        %v846 = vshrl.u32 %v600, 16
        %v848 = vrot.slane %v846, 7
        %v849 = vshll.u32 %v600, 16
        %v851 = vor.u32 %v848, %v849
        %v852 = vrot.slane %v848, 4
        %v854 = vshrl.u32 %v601, 16
        %v856 = vrot.slane %v854, 7
        %v857 = vshll.u32 %v601, 16
        %v859 = vor.u32 %v856, %v857
        %v860 = vsel %vm606, %v852, %v859
        %v861 = vrot.slane %v856, 4
        %v863 = vshrl.u32 %v602, 16
        %v865 = vrot.slane %v863, 7
        %v866 = vshll.u32 %v602, 16
        %v868 = vor.u32 %v865, %v866
        %v869 = vrot.slane %v865, 4
        %v871 = vshrl.u32 %v603, 16
        %v873 = vrot.slane %v871, 7
        %v874 = vshll.u32 %v603, 16
        %v876 = vor.u32 %v873, %v874
        %v877 = vsel %vm606, %v869, %v876
        %v878 = vrot.slane %v873, 4
        %s927 = scalar_lea.vmem [#allocation2], 12
        %vm928 = vcmask 125952
        %vm929 = vsmask.f32 7938
        %vm930 = vmand %vm928, %vm929
        %v931 = vld [vmem:[%s927] sm:$0xf]
        %v932 = vsel %vm930, %v613, %v931
        %933 = vst [vmem:[%s927] sm:$0xf] %v932
        %934 = vst.msk [vmem:[%s927 + $0x4] sm:$0xf] %vm516, %v622
        %vm935 = vcmask 122880
        %vm936 = vmand %vm935, %vm604
        %v937 = vld [vmem:[%s927 + $0x8] sm:$0x1]
        %v938 = vsel %vm936, %v623, %v937
        %939 = vst [vmem:[%s927 + $0x8] sm:$0x1] %v938
        %v940 = vld [vmem:[%s927 + $0xc] sm:$0xf]
        %v941 = vsel %vm930, %v630, %v940
        %942 = vst [vmem:[%s927 + $0xc] sm:$0xf] %v941
        %943 = vst.msk [vmem:[%s927 + $0x10] sm:$0xf] %vm516, %v639
        %v944 = vld [vmem:[%s927 + $0x14] sm:$0x1]
        %v945 = vsel %vm936, %v640, %v944
        %946 = vst [vmem:[%s927 + $0x14] sm:$0x1] %v945
        %v947 = vld [vmem:[%s927 + $0x18] sm:$0xf]
        %v948 = vsel %vm930, %v647, %v947
        %949 = vst [vmem:[%s927 + $0x18] sm:$0xf] %v948
        %950 = vst.msk [vmem:[%s927 + $0x1c] sm:$0xf] %vm516, %v656
        %v951 = vld [vmem:[%s927 + $0x20] sm:$0x1]
        %v952 = vsel %vm936, %v657, %v951
        %953 = vst [vmem:[%s927 + $0x20] sm:$0x1] %v952
        %v954 = vld [vmem:[%s927 + $0x24] sm:$0xf]
        %v955 = vsel %vm930, %v664, %v954
        %956 = vst [vmem:[%s927 + $0x24] sm:$0xf] %v955
        %957 = vst.msk [vmem:[%s927 + $0x28] sm:$0xf] %vm516, %v673
        %v958 = vld [vmem:[%s927 + $0x2c] sm:$0x1]
        %v959 = vsel %vm936, %v674, %v958
        %960 = vst [vmem:[%s927 + $0x2c] sm:$0x1] %v959
        %v961 = vld [vmem:[%s927 + $0x30] sm:$0xf]
        %v962 = vsel %vm930, %v681, %v961
        %963 = vst [vmem:[%s927 + $0x30] sm:$0xf] %v962
        %964 = vst.msk [vmem:[%s927 + $0x34] sm:$0xf] %vm516, %v690
        %v965 = vld [vmem:[%s927 + $0x38] sm:$0x1]
        %v966 = vsel %vm936, %v691, %v965
        %967 = vst [vmem:[%s927 + $0x38] sm:$0x1] %v966
        %v968 = vld [vmem:[%s927 + $0x3c] sm:$0xf]
        %v969 = vsel %vm930, %v698, %v968
        %970 = vst [vmem:[%s927 + $0x3c] sm:$0xf] %v969
        %971 = vst.msk [vmem:[%s927 + $0x40] sm:$0xf] %vm516, %v707
        %v972 = vld [vmem:[%s927 + $0x44] sm:$0x1]
        %v973 = vsel %vm936, %v708, %v972
        %974 = vst [vmem:[%s927 + $0x44] sm:$0x1] %v973
        %v975 = vld [vmem:[%s927 + $0x48] sm:$0xf]
        %v976 = vsel %vm930, %v715, %v975
        %977 = vst [vmem:[%s927 + $0x48] sm:$0xf] %v976
        %978 = vst.msk [vmem:[%s927 + $0x4c] sm:$0xf] %vm516, %v724
        %v979 = vld [vmem:[%s927 + $0x50] sm:$0x1]
        %v980 = vsel %vm936, %v725, %v979
        %981 = vst [vmem:[%s927 + $0x50] sm:$0x1] %v980
        %v982 = vld [vmem:[%s927 + $0x54] sm:$0xf]
        %v983 = vsel %vm930, %v732, %v982
        %984 = vst [vmem:[%s927 + $0x54] sm:$0xf] %v983
        %985 = vst.msk [vmem:[%s927 + $0x58] sm:$0xf] %vm516, %v741
        %v986 = vld [vmem:[%s927 + $0x5c] sm:$0x1]
        %v987 = vsel %vm936, %v742, %v986
        %988 = vst [vmem:[%s927 + $0x5c] sm:$0x1] %v987
        %v989 = vld [vmem:[%s927 + $0x60] sm:$0xf]
        %v990 = vsel %vm930, %v749, %v989
        %991 = vst [vmem:[%s927 + $0x60] sm:$0xf] %v990
        %992 = vst.msk [vmem:[%s927 + $0x64] sm:$0xf] %vm516, %v758
        %v993 = vld [vmem:[%s927 + $0x68] sm:$0x1]
        %v994 = vsel %vm936, %v759, %v993
        %995 = vst [vmem:[%s927 + $0x68] sm:$0x1] %v994
        %v996 = vld [vmem:[%s927 + $0x6c] sm:$0xf]
        %v997 = vsel %vm930, %v766, %v996
        %998 = vst [vmem:[%s927 + $0x6c] sm:$0xf] %v997
        %999 = vst.msk [vmem:[%s927 + $0x70] sm:$0xf] %vm516, %v775
        %v1000 = vld [vmem:[%s927 + $0x74] sm:$0x1]
        %v1001 = vsel %vm936, %v776, %v1000
        %1002 = vst [vmem:[%s927 + $0x74] sm:$0x1] %v1001
        %v1003 = vld [vmem:[%s927 + $0x78] sm:$0xf]
        %v1004 = vsel %vm930, %v783, %v1003
        %1005 = vst [vmem:[%s927 + $0x78] sm:$0xf] %v1004
        %1006 = vst.msk [vmem:[%s927 + $0x7c] sm:$0xf] %vm516, %v792
        %v1007 = vld [vmem:[%s927 + $0x80] sm:$0x1]
        %v1008 = vsel %vm936, %v793, %v1007
        %1009 = vst [vmem:[%s927 + $0x80] sm:$0x1] %v1008
        %v1010 = vld [vmem:[%s927 + $0x84] sm:$0xf]
        %v1011 = vsel %vm930, %v800, %v1010
        %1012 = vst [vmem:[%s927 + $0x84] sm:$0xf] %v1011
        %1013 = vst.msk [vmem:[%s927 + $0x88] sm:$0xf] %vm516, %v809
        %v1014 = vld [vmem:[%s927 + $0x8c] sm:$0x1]
        %v1015 = vsel %vm936, %v810, %v1014
        %1016 = vst [vmem:[%s927 + $0x8c] sm:$0x1] %v1015
        %v1017 = vld [vmem:[%s927 + $0x90] sm:$0xf]
        %v1018 = vsel %vm930, %v817, %v1017
        %1019 = vst [vmem:[%s927 + $0x90] sm:$0xf] %v1018
        %1020 = vst.msk [vmem:[%s927 + $0x94] sm:$0xf] %vm516, %v826
        %v1021 = vld [vmem:[%s927 + $0x98] sm:$0x1]
        %v1022 = vsel %vm936, %v827, %v1021
        %1023 = vst [vmem:[%s927 + $0x98] sm:$0x1] %v1022
        %v1024 = vld [vmem:[%s927 + $0x9c] sm:$0xf]
        %v1025 = vsel %vm930, %v834, %v1024
        %1026 = vst [vmem:[%s927 + $0x9c] sm:$0xf] %v1025
        %1027 = vst.msk [vmem:[%s927 + $0xa0] sm:$0xf] %vm516, %v843
        %v1028 = vld [vmem:[%s927 + $0xa4] sm:$0x1]
        %v1029 = vsel %vm936, %v844, %v1028
        %1030 = vst [vmem:[%s927 + $0xa4] sm:$0x1] %v1029
        %v1031 = vld [vmem:[%s927 + $0xa8] sm:$0xf]
        %v1032 = vsel %vm930, %v851, %v1031
        %1033 = vst [vmem:[%s927 + $0xa8] sm:$0xf] %v1032
        %1034 = vst.msk [vmem:[%s927 + $0xac] sm:$0xf] %vm516, %v860
        %v1035 = vld [vmem:[%s927 + $0xb0] sm:$0x1]
        %v1036 = vsel %vm936, %v861, %v1035
        %1037 = vst [vmem:[%s927 + $0xb0] sm:$0x1] %v1036
        %v1038 = vld [vmem:[%s927 + $0xb4] sm:$0xf]
        %v1039 = vsel %vm930, %v868, %v1038
        %1040 = vst [vmem:[%s927 + $0xb4] sm:$0xf] %v1039
        %1041 = vst.msk [vmem:[%s927 + $0xb8] sm:$0xf] %vm516, %v877
        %v1042 = vld [vmem:[%s927 + $0xbc] sm:$0x1]
        %v1043 = vsel %vm936, %v878, %v1042
        %1044 = vst [vmem:[%s927 + $0xbc] sm:$0x1] %v1043
        %v1045 = vld [vmem:[#allocation2] sm:$0xf]
        %v1046 = vld [vmem:[#allocation2 + $0x4] sm:$0xf]
        %v1047 = vld [vmem:[#allocation2 + $0x8] sm:$0x1]
        %v1048 = vld [vmem:[#allocation2 + $0xc] sm:$0xf]
        %v1049 = vld [vmem:[#allocation2 + $0x10] sm:$0xf]
        %v1050 = vld [vmem:[#allocation2 + $0x14] sm:$0x1]
        %v1051 = vld [vmem:[#allocation2 + $0x18] sm:$0xf]
        %v1052 = vld [vmem:[#allocation2 + $0x1c] sm:$0xf]
        %v1053 = vld [vmem:[#allocation2 + $0x20] sm:$0x1]
        %v1054 = vld [vmem:[#allocation2 + $0x24] sm:$0xf]
        %v1055 = vld [vmem:[#allocation2 + $0x28] sm:$0xf]
        %v1056 = vld [vmem:[#allocation2 + $0x2c] sm:$0x1]
        %v1057 = vld [vmem:[#allocation2 + $0x30] sm:$0xf]
        %v1058 = vld [vmem:[#allocation2 + $0x34] sm:$0xf]
        %v1059 = vld [vmem:[#allocation2 + $0x38] sm:$0x1]
        %v1060 = vld [vmem:[#allocation2 + $0x3c] sm:$0xf]
        %v1061 = vld [vmem:[#allocation2 + $0x40] sm:$0xf]
        %v1062 = vld [vmem:[#allocation2 + $0x44] sm:$0x1]
        %v1063 = vld [vmem:[#allocation2 + $0x48] sm:$0xf]
        %v1064 = vld [vmem:[#allocation2 + $0x4c] sm:$0xf]
        %v1065 = vld [vmem:[#allocation2 + $0x50] sm:$0x1]
        %v1066 = vld [vmem:[#allocation2 + $0x54] sm:$0xf]
        %v1067 = vld [vmem:[#allocation2 + $0x58] sm:$0xf]
        %v1068 = vld [vmem:[#allocation2 + $0x5c] sm:$0x1]
        %v1069 = vld [vmem:[#allocation2 + $0x60] sm:$0xf]
        %v1070 = vld [vmem:[#allocation2 + $0x64] sm:$0xf]
        %v1071 = vld [vmem:[#allocation2 + $0x68] sm:$0x1]
        %v1072 = vld [vmem:[#allocation2 + $0x6c] sm:$0xf]
        %v1073 = vld [vmem:[#allocation2 + $0x70] sm:$0xf]
        %v1074 = vld [vmem:[#allocation2 + $0x74] sm:$0x1]
        %v1075 = vld [vmem:[#allocation2 + $0x78] sm:$0xf]
        %v1076 = vld [vmem:[#allocation2 + $0x7c] sm:$0xf]
        %v1077 = vld [vmem:[#allocation2 + $0x80] sm:$0x1]
        %v1078 = vld [vmem:[#allocation2 + $0x84] sm:$0xf]
        %v1079 = vld [vmem:[#allocation2 + $0x88] sm:$0xf]
        %v1080 = vld [vmem:[#allocation2 + $0x8c] sm:$0x1]
        %v1081 = vld [vmem:[#allocation2 + $0x90] sm:$0xf]
        %v1082 = vld [vmem:[#allocation2 + $0x94] sm:$0xf]
        %v1083 = vld [vmem:[#allocation2 + $0x98] sm:$0x1]
        %v1084 = vld [vmem:[#allocation2 + $0x9c] sm:$0xf]
        %v1085 = vld [vmem:[#allocation2 + $0xa0] sm:$0xf]
        %v1086 = vld [vmem:[#allocation2 + $0xa4] sm:$0x1]
        %v1087 = vld [vmem:[#allocation2 + $0xa8] sm:$0xf]
        %v1088 = vld [vmem:[#allocation2 + $0xac] sm:$0xf]
        %v1089 = vld [vmem:[#allocation2 + $0xb0] sm:$0x1]
        %v1090 = vld [vmem:[#allocation2 + $0xb4] sm:$0xf]
        %v1091 = vld [vmem:[#allocation2 + $0xb8] sm:$0xf]
        %v1092 = vld [vmem:[#allocation2 + $0xbc] sm:$0x1]
        %v1093 = vld [vmem:[#allocation2 + $0xc0] sm:$0xf]
        %v1094 = vld [vmem:[#allocation2 + $0xc4] sm:$0xf]
        %v1095 = vld [vmem:[#allocation2 + $0xc8] sm:$0x1]
        %v1096 = vld [vmem:[#allocation2 + $0xcc] sm:$0xf]
        %v1097 = vld [vmem:[#allocation2 + $0xd0] sm:$0xf]
        %v1098 = vld [vmem:[#allocation2 + $0xd4] sm:$0x1]
        %v1131 = vunpack.c.l.b16 %v1045
        %v1132 = vunpack.c.l.b16 %v1046
        %v1133 = vunpack.c.l.b16 %v1048
        %v1134 = vunpack.c.l.b16 %v1049
        %v1135 = vunpack.c.l.b16 %v1051
        %v1136 = vunpack.c.l.b16 %v1052
        %v1137 = vunpack.c.l.b16 %v1054
        %v1138 = vunpack.c.l.b16 %v1055
        %v1139 = vunpack.c.l.b16 %v1057
        %v1140 = vunpack.c.l.b16 %v1058
        %v1141 = vunpack.c.l.b16 %v1060
        %v1142 = vunpack.c.l.b16 %v1061
        %v1143 = vunpack.c.l.b16 %v1063
        %v1144 = vunpack.c.l.b16 %v1064
        %v1145 = vunpack.c.l.b16 %v1066
        %v1146 = vunpack.c.l.b16 %v1067
        %v1147 = vunpack.c.l.b16 %v1069
        %v1148 = vunpack.c.l.b16 %v1070
        %v1149 = vunpack.c.l.b16 %v1072
        %v1150 = vunpack.c.l.b16 %v1073
        %v1151 = vunpack.c.l.b16 %v1075
        %v1152 = vunpack.c.l.b16 %v1076
        %v1153 = vunpack.c.l.b16 %v1078
        %v1154 = vunpack.c.l.b16 %v1079
        %v1155 = vunpack.c.l.b16 %v1081
        %v1156 = vunpack.c.l.b16 %v1082
        %v1157 = vunpack.c.l.b16 %v1084
        %v1158 = vunpack.c.l.b16 %v1085
        %v1159 = vunpack.c.l.b16 %v1087
        %v1160 = vunpack.c.l.b16 %v1088
        %v1161 = vunpack.c.l.b16 %v1090
        %v1162 = vunpack.c.l.b16 %v1091
        %v1163 = vpack.c.b16 %v1132, %v1131
        %v1164 = vpack.c.b16 %v1134, %v1133
        %v1165 = vpack.c.b16 %v1136, %v1135
        %v1166 = vpack.c.b16 %v1138, %v1137
        %v1167 = vpack.c.b16 %v1140, %v1139
        %v1168 = vpack.c.b16 %v1142, %v1141
        %v1169 = vpack.c.b16 %v1144, %v1143
        %v1170 = vpack.c.b16 %v1146, %v1145
        %v1171 = vpack.c.b16 %v1148, %v1147
        %v1172 = vpack.c.b16 %v1150, %v1149
        %v1173 = vpack.c.b16 %v1152, %v1151
        %v1174 = vpack.c.b16 %v1154, %v1153
        %v1175 = vpack.c.b16 %v1156, %v1155
        %v1176 = vpack.c.b16 %v1158, %v1157
        %v1177 = vpack.c.b16 %v1160, %v1159
        %v1178 = vpack.c.b16 %v1162, %v1161
        %v1195 = vunpack.c.l.b16 %v1047
        %v1196 = vunpack.c.l.b16 %v1050
        %v1197 = vunpack.c.l.b16 %v1053
        %v1198 = vunpack.c.l.b16 %v1056
        %v1199 = vunpack.c.l.b16 %v1059
        %v1200 = vunpack.c.l.b16 %v1062
        %v1201 = vunpack.c.l.b16 %v1065
        %v1202 = vunpack.c.l.b16 %v1068
        %v1203 = vunpack.c.l.b16 %v1071
        %v1204 = vunpack.c.l.b16 %v1074
        %v1205 = vunpack.c.l.b16 %v1077
        %v1206 = vunpack.c.l.b16 %v1080
        %v1207 = vunpack.c.l.b16 %v1083
        %v1208 = vunpack.c.l.b16 %v1086
        %v1209 = vunpack.c.l.b16 %v1089
        %v1210 = vunpack.c.l.b16 %v1092
        %v1211 = vpack.c.b16 %v1195, %v1195
        %v1212 = vpack.c.b16 %v1196, %v1196
        %v1213 = vpack.c.b16 %v1197, %v1197
        %v1214 = vpack.c.b16 %v1198, %v1198
        %v1215 = vpack.c.b16 %v1199, %v1199
        %v1216 = vpack.c.b16 %v1200, %v1200
        %v1217 = vpack.c.b16 %v1201, %v1201
        %v1218 = vpack.c.b16 %v1202, %v1202
        %v1219 = vpack.c.b16 %v1203, %v1203
        %v1220 = vpack.c.b16 %v1204, %v1204
        %v1221 = vpack.c.b16 %v1205, %v1205
        %v1222 = vpack.c.b16 %v1206, %v1206
        %v1223 = vpack.c.b16 %v1207, %v1207
        %v1224 = vpack.c.b16 %v1208, %v1208
        %v1225 = vpack.c.b16 %v1209, %v1209
        %v1226 = vpack.c.b16 %v1210, %v1210
        %vm1227 = vsmask.f32 7424
        %v1229 = vshrl.u32 %v1163, 16
        %v1231 = vshll.u32 %v1163, 16
        %v1233 = vrot.slane %v1231, 1
        %v1234 = vor.u32 %v1229, %v1233
        %v1236 = vshll.u32 %v1211, 16
        %v1238 = vrot.slane %v1236, 1
        %v1239 = vsel %vm1227, %v1234, %v1238
        %v1241 = vshrl.u32 %v1164, 16
        %v1243 = vshll.u32 %v1164, 16
        %v1245 = vrot.slane %v1243, 1
        %v1246 = vor.u32 %v1241, %v1245
        %v1248 = vshll.u32 %v1212, 16
        %v1250 = vrot.slane %v1248, 1
        %v1251 = vsel %vm1227, %v1246, %v1250
        %v1253 = vshrl.u32 %v1165, 16
        %v1255 = vshll.u32 %v1165, 16
        %v1257 = vrot.slane %v1255, 1
        %v1258 = vor.u32 %v1253, %v1257
        %v1260 = vshll.u32 %v1213, 16
        %v1262 = vrot.slane %v1260, 1
        %v1263 = vsel %vm1227, %v1258, %v1262
        %v1265 = vshrl.u32 %v1166, 16
        %v1267 = vshll.u32 %v1166, 16
        %v1269 = vrot.slane %v1267, 1
        %v1270 = vor.u32 %v1265, %v1269
        %v1272 = vshll.u32 %v1214, 16
        %v1274 = vrot.slane %v1272, 1
        %v1275 = vsel %vm1227, %v1270, %v1274
        %v1277 = vshrl.u32 %v1167, 16
        %v1279 = vshll.u32 %v1167, 16
        %v1281 = vrot.slane %v1279, 1
        %v1282 = vor.u32 %v1277, %v1281
        %v1284 = vshll.u32 %v1215, 16
        %v1286 = vrot.slane %v1284, 1
        %v1287 = vsel %vm1227, %v1282, %v1286
        %v1289 = vshrl.u32 %v1168, 16
        %v1291 = vshll.u32 %v1168, 16
        %v1293 = vrot.slane %v1291, 1
        %v1294 = vor.u32 %v1289, %v1293
        %v1296 = vshll.u32 %v1216, 16
        %v1298 = vrot.slane %v1296, 1
        %v1299 = vsel %vm1227, %v1294, %v1298
        %v1301 = vshrl.u32 %v1169, 16
        %v1303 = vshll.u32 %v1169, 16
        %v1305 = vrot.slane %v1303, 1
        %v1306 = vor.u32 %v1301, %v1305
        %v1308 = vshll.u32 %v1217, 16
        %v1310 = vrot.slane %v1308, 1
        %v1311 = vsel %vm1227, %v1306, %v1310
        %v1313 = vshrl.u32 %v1170, 16
        %v1315 = vshll.u32 %v1170, 16
        %v1317 = vrot.slane %v1315, 1
        %v1318 = vor.u32 %v1313, %v1317
        %v1320 = vshll.u32 %v1218, 16
        %v1322 = vrot.slane %v1320, 1
        %v1323 = vsel %vm1227, %v1318, %v1322
        %v1325 = vshrl.u32 %v1171, 16
        %v1327 = vshll.u32 %v1171, 16
        %v1329 = vrot.slane %v1327, 1
        %v1330 = vor.u32 %v1325, %v1329
        %v1332 = vshll.u32 %v1219, 16
        %v1334 = vrot.slane %v1332, 1
        %v1335 = vsel %vm1227, %v1330, %v1334
        %v1337 = vshrl.u32 %v1172, 16
        %v1339 = vshll.u32 %v1172, 16
        %v1341 = vrot.slane %v1339, 1
        %v1342 = vor.u32 %v1337, %v1341
        %v1344 = vshll.u32 %v1220, 16
        %v1346 = vrot.slane %v1344, 1
        %v1347 = vsel %vm1227, %v1342, %v1346
        %v1349 = vshrl.u32 %v1173, 16
        %v1351 = vshll.u32 %v1173, 16
        %v1353 = vrot.slane %v1351, 1
        %v1354 = vor.u32 %v1349, %v1353
        %v1356 = vshll.u32 %v1221, 16
        %v1358 = vrot.slane %v1356, 1
        %v1359 = vsel %vm1227, %v1354, %v1358
        %v1361 = vshrl.u32 %v1174, 16
        %v1363 = vshll.u32 %v1174, 16
        %v1365 = vrot.slane %v1363, 1
        %v1366 = vor.u32 %v1361, %v1365
        %v1368 = vshll.u32 %v1222, 16
        %v1370 = vrot.slane %v1368, 1
        %v1371 = vsel %vm1227, %v1366, %v1370
        %v1373 = vshrl.u32 %v1175, 16
        %v1375 = vshll.u32 %v1175, 16
        %v1377 = vrot.slane %v1375, 1
        %v1378 = vor.u32 %v1373, %v1377
        %v1380 = vshll.u32 %v1223, 16
        %v1382 = vrot.slane %v1380, 1
        %v1383 = vsel %vm1227, %v1378, %v1382
        %v1385 = vshrl.u32 %v1176, 16
        %v1387 = vshll.u32 %v1176, 16
        %v1389 = vrot.slane %v1387, 1
        %v1390 = vor.u32 %v1385, %v1389
        %v1392 = vshll.u32 %v1224, 16
        %v1394 = vrot.slane %v1392, 1
        %v1395 = vsel %vm1227, %v1390, %v1394
        %v1397 = vshrl.u32 %v1177, 16
        %v1399 = vshll.u32 %v1177, 16
        %v1401 = vrot.slane %v1399, 1
        %v1402 = vor.u32 %v1397, %v1401
        %v1404 = vshll.u32 %v1225, 16
        %v1406 = vrot.slane %v1404, 1
        %v1407 = vsel %vm1227, %v1402, %v1406
        %v1409 = vshrl.u32 %v1178, 16
        %v1411 = vshll.u32 %v1178, 16
        %v1413 = vrot.slane %v1411, 1
        %v1414 = vor.u32 %v1409, %v1413
        %v1416 = vshll.u32 %v1226, 16
        %v1418 = vrot.slane %v1416, 1
        %v1419 = vsel %vm1227, %v1414, %v1418
        %1420 = vrot.lane.b32.xlu0 %v1239, 16
        %v1421 = vpop.permute.xlu0 %1420
        %1422 = vrot.lane.b32.xlu0 %v1251, 16
        %v1423 = vpop.permute.xlu0 %1422
        %1424 = vrot.lane.b32.xlu0 %v1263, 16
        %v1425 = vpop.permute.xlu0 %1424
        %1426 = vrot.lane.b32.xlu0 %v1275, 16
        %v1427 = vpop.permute.xlu0 %1426
        %1428 = vrot.lane.b32.xlu0 %v1287, 16
        %v1429 = vpop.permute.xlu0 %1428
        %1430 = vrot.lane.b32.xlu0 %v1299, 16
        %v1431 = vpop.permute.xlu0 %1430
        %1432 = vrot.lane.b32.xlu0 %v1311, 16
        %v1433 = vpop.permute.xlu0 %1432
        %1434 = vrot.lane.b32.xlu0 %v1323, 16
        %v1435 = vpop.permute.xlu0 %1434
        %1436 = vrot.lane.b32.xlu0 %v1335, 16
        %v1437 = vpop.permute.xlu0 %1436
        %1438 = vrot.lane.b32.xlu0 %v1347, 16
        %v1439 = vpop.permute.xlu0 %1438
        %1440 = vrot.lane.b32.xlu0 %v1359, 16
        %v1441 = vpop.permute.xlu0 %1440
        %1442 = vrot.lane.b32.xlu0 %v1371, 16
        %v1443 = vpop.permute.xlu0 %1442
        %1444 = vrot.lane.b32.xlu0 %v1383, 16
        %v1445 = vpop.permute.xlu0 %1444
        %1446 = vrot.lane.b32.xlu0 %v1395, 16
        %v1447 = vpop.permute.xlu0 %1446
        %1448 = vrot.lane.b32.xlu0 %v1407, 16
        %v1449 = vpop.permute.xlu0 %1448
        %1450 = vrot.lane.b32.xlu0 %v1419, 16
        %v1451 = vpop.permute.xlu0 %1450
        %vm1452 = vcmask 1046528
        %v1453 = vrot.slane %v1163, 1
        %v1454 = vrot.slane %v1211, 1
        %v1455 = vsel %vm1452, %v1453, %v1454
        %v1456 = vrot.slane %v1164, 1
        %v1457 = vrot.slane %v1212, 1
        %v1458 = vsel %vm1452, %v1456, %v1457
        %v1459 = vrot.slane %v1165, 1
        %v1460 = vrot.slane %v1213, 1
        %v1461 = vsel %vm1452, %v1459, %v1460
        %v1462 = vrot.slane %v1166, 1
        %v1463 = vrot.slane %v1214, 1
        %v1464 = vsel %vm1452, %v1462, %v1463
        %v1465 = vrot.slane %v1167, 1
        %v1466 = vrot.slane %v1215, 1
        %v1467 = vsel %vm1452, %v1465, %v1466
        %v1468 = vrot.slane %v1168, 1
        %v1469 = vrot.slane %v1216, 1
        %v1470 = vsel %vm1452, %v1468, %v1469
        %v1471 = vrot.slane %v1169, 1
        %v1472 = vrot.slane %v1217, 1
        %v1473 = vsel %vm1452, %v1471, %v1472
        %v1474 = vrot.slane %v1170, 1
        %v1475 = vrot.slane %v1218, 1
        %v1476 = vsel %vm1452, %v1474, %v1475
        %v1477 = vrot.slane %v1171, 1
        %v1478 = vrot.slane %v1219, 1
        %v1479 = vsel %vm1452, %v1477, %v1478
        %v1480 = vrot.slane %v1172, 1
        %v1481 = vrot.slane %v1220, 1
        %v1482 = vsel %vm1452, %v1480, %v1481
        %v1483 = vrot.slane %v1173, 1
        %v1484 = vrot.slane %v1221, 1
        %v1485 = vsel %vm1452, %v1483, %v1484
        %v1486 = vrot.slane %v1174, 1
        %v1487 = vrot.slane %v1222, 1
        %v1488 = vsel %vm1452, %v1486, %v1487
        %v1489 = vrot.slane %v1175, 1
        %v1490 = vrot.slane %v1223, 1
        %v1491 = vsel %vm1452, %v1489, %v1490
        %v1492 = vrot.slane %v1176, 1
        %v1493 = vrot.slane %v1224, 1
        %v1494 = vsel %vm1452, %v1492, %v1493
        %v1495 = vrot.slane %v1177, 1
        %v1496 = vrot.slane %v1225, 1
        %v1497 = vsel %vm1452, %v1495, %v1496
        %v1498 = vrot.slane %v1178, 1
        %v1499 = vrot.slane %v1226, 1
        %v1500 = vsel %vm1452, %v1498, %v1499
        %1501 = vrot.lane.b32.xlu0 %v1455, 32
        %v1502 = vpop.permute.xlu0 %1501
        %1503 = vrot.lane.b32.xlu0 %v1458, 32
        %v1504 = vpop.permute.xlu0 %1503
        %1505 = vrot.lane.b32.xlu0 %v1461, 32
        %v1506 = vpop.permute.xlu0 %1505
        %1507 = vrot.lane.b32.xlu0 %v1464, 32
        %v1508 = vpop.permute.xlu0 %1507
        %1509 = vrot.lane.b32.xlu0 %v1467, 32
        %v1510 = vpop.permute.xlu0 %1509
        %1511 = vrot.lane.b32.xlu0 %v1470, 32
        %v1512 = vpop.permute.xlu0 %1511
        %1513 = vrot.lane.b32.xlu0 %v1473, 32
        %v1514 = vpop.permute.xlu0 %1513
        %1515 = vrot.lane.b32.xlu0 %v1476, 32
        %v1516 = vpop.permute.xlu0 %1515
        %1517 = vrot.lane.b32.xlu0 %v1479, 32
        %v1518 = vpop.permute.xlu0 %1517
        %1519 = vrot.lane.b32.xlu0 %v1482, 32
        %v1520 = vpop.permute.xlu0 %1519
        %1521 = vrot.lane.b32.xlu0 %v1485, 32
        %v1522 = vpop.permute.xlu0 %1521
        %1523 = vrot.lane.b32.xlu0 %v1488, 32
        %v1524 = vpop.permute.xlu0 %1523
        %1525 = vrot.lane.b32.xlu0 %v1491, 32
        %v1526 = vpop.permute.xlu0 %1525
        %1527 = vrot.lane.b32.xlu0 %v1494, 32
        %v1528 = vpop.permute.xlu0 %1527
        %1529 = vrot.lane.b32.xlu0 %v1497, 32
        %v1530 = vpop.permute.xlu0 %1529
        %1531 = vrot.lane.b32.xlu0 %v1500, 32
        %v1532 = vpop.permute.xlu0 %1531
        %v1535 = vunpack.c.l.b16 %v1093
        %v1536 = vunpack.c.l.b16 %v1094
        %v1537 = vpack.c.b16 %v1536, %v1535
        %1538 = vrot.lane.b32.xlu0 %v1164, 48
        %v1539 = vpop.permute.xlu0 %1538
        %1540 = vrot.lane.b32.xlu0 %v1165, 48
        %v1541 = vpop.permute.xlu0 %1540
        %1542 = vrot.lane.b32.xlu0 %v1166, 48
        %v1543 = vpop.permute.xlu0 %1542
        %1544 = vrot.lane.b32.xlu0 %v1167, 48
        %v1545 = vpop.permute.xlu0 %1544
        %1546 = vrot.lane.b32.xlu0 %v1168, 48
        %v1547 = vpop.permute.xlu0 %1546
        %1548 = vrot.lane.b32.xlu0 %v1169, 48
        %v1549 = vpop.permute.xlu0 %1548
        %1550 = vrot.lane.b32.xlu0 %v1170, 48
        %v1551 = vpop.permute.xlu0 %1550
        %1552 = vrot.lane.b32.xlu0 %v1171, 48
        %v1553 = vpop.permute.xlu0 %1552
        %1554 = vrot.lane.b32.xlu0 %v1172, 48
        %v1555 = vpop.permute.xlu0 %1554
        %1556 = vrot.lane.b32.xlu0 %v1173, 48
        %v1557 = vpop.permute.xlu0 %1556
        %1558 = vrot.lane.b32.xlu0 %v1174, 48
        %v1559 = vpop.permute.xlu0 %1558
        %1560 = vrot.lane.b32.xlu0 %v1175, 48
        %v1561 = vpop.permute.xlu0 %1560
        %1562 = vrot.lane.b32.xlu0 %v1176, 48
        %v1563 = vpop.permute.xlu0 %1562
        %1564 = vrot.lane.b32.xlu0 %v1177, 48
        %v1565 = vpop.permute.xlu0 %1564
        %1566 = vrot.lane.b32.xlu0 %v1178, 48
        %v1567 = vpop.permute.xlu0 %1566
        %1568 = vrot.lane.b32.xlu0 %v1537, 48
        %v1569 = vpop.permute.xlu0 %1568
        %v1571 = vunpack.c.l.b16 %v1095
        %v1572 = vpack.c.b16 %v1571, %v1571
        %v1574 = vshrl.u32 %v1537, 16
        %v1576 = vshll.u32 %v1537, 16
        %v1578 = vrot.slane %v1576, 1
        %v1579 = vor.u32 %v1574, %v1578
        %v1581 = vshll.u32 %v1572, 16
        %v1583 = vrot.slane %v1581, 1
        %v1584 = vsel %vm1227, %v1579, %v1583
        %1585 = vrot.lane.b32.xlu0 %v1251, 64
        %v1586 = vpop.permute.xlu0 %1585
        %1587 = vrot.lane.b32.xlu0 %v1263, 64
        %v1588 = vpop.permute.xlu0 %1587
        %1589 = vrot.lane.b32.xlu0 %v1275, 64
        %v1590 = vpop.permute.xlu0 %1589
        %1591 = vrot.lane.b32.xlu0 %v1287, 64
        %v1592 = vpop.permute.xlu0 %1591
        %1593 = vrot.lane.b32.xlu0 %v1299, 64
        %v1594 = vpop.permute.xlu0 %1593
        %1595 = vrot.lane.b32.xlu0 %v1311, 64
        %v1596 = vpop.permute.xlu0 %1595
        %1597 = vrot.lane.b32.xlu0 %v1323, 64
        %v1598 = vpop.permute.xlu0 %1597
        %1599 = vrot.lane.b32.xlu0 %v1335, 64
        %v1600 = vpop.permute.xlu0 %1599
        %1601 = vrot.lane.b32.xlu0 %v1347, 64
        %v1602 = vpop.permute.xlu0 %1601
        %1603 = vrot.lane.b32.xlu0 %v1359, 64
        %v1604 = vpop.permute.xlu0 %1603
        %1605 = vrot.lane.b32.xlu0 %v1371, 64
        %v1606 = vpop.permute.xlu0 %1605
        %1607 = vrot.lane.b32.xlu0 %v1383, 64
        %v1608 = vpop.permute.xlu0 %1607
        %1609 = vrot.lane.b32.xlu0 %v1395, 64
        %v1610 = vpop.permute.xlu0 %1609
        %1611 = vrot.lane.b32.xlu0 %v1407, 64
        %v1612 = vpop.permute.xlu0 %1611
        %1613 = vrot.lane.b32.xlu0 %v1419, 64
        %v1614 = vpop.permute.xlu0 %1613
        %1615 = vrot.lane.b32.xlu0 %v1584, 64
        %v1616 = vpop.permute.xlu0 %1615
        %v1617 = vrot.slane %v1537, 1
        %v1618 = vrot.slane %v1572, 1
        %v1619 = vsel %vm1452, %v1617, %v1618
        %1620 = vrot.lane.b32.xlu0 %v1458, 80
        %v1621 = vpop.permute.xlu0 %1620
        %1622 = vrot.lane.b32.xlu0 %v1461, 80
        %v1623 = vpop.permute.xlu0 %1622
        %1624 = vrot.lane.b32.xlu0 %v1464, 80
        %v1625 = vpop.permute.xlu0 %1624
        %1626 = vrot.lane.b32.xlu0 %v1467, 80
        %v1627 = vpop.permute.xlu0 %1626
        %1628 = vrot.lane.b32.xlu0 %v1470, 80
        %v1629 = vpop.permute.xlu0 %1628
        %1630 = vrot.lane.b32.xlu0 %v1473, 80
        %v1631 = vpop.permute.xlu0 %1630
        %1632 = vrot.lane.b32.xlu0 %v1476, 80
        %v1633 = vpop.permute.xlu0 %1632
        %1634 = vrot.lane.b32.xlu0 %v1479, 80
        %v1635 = vpop.permute.xlu0 %1634
        %1636 = vrot.lane.b32.xlu0 %v1482, 80
        %v1637 = vpop.permute.xlu0 %1636
        %1638 = vrot.lane.b32.xlu0 %v1485, 80
        %v1639 = vpop.permute.xlu0 %1638
        %1640 = vrot.lane.b32.xlu0 %v1488, 80
        %v1641 = vpop.permute.xlu0 %1640
        %1642 = vrot.lane.b32.xlu0 %v1491, 80
        %v1643 = vpop.permute.xlu0 %1642
        %1644 = vrot.lane.b32.xlu0 %v1494, 80
        %v1645 = vpop.permute.xlu0 %1644
        %1646 = vrot.lane.b32.xlu0 %v1497, 80
        %v1647 = vpop.permute.xlu0 %1646
        %1648 = vrot.lane.b32.xlu0 %v1500, 80
        %v1649 = vpop.permute.xlu0 %1648
        %1650 = vrot.lane.b32.xlu0 %v1619, 80
        %v1651 = vpop.permute.xlu0 %1650
        %v1654 = vunpack.c.l.b16 %v1096
        %v1655 = vunpack.c.l.b16 %v1097
        %v1656 = vpack.c.b16 %v1655, %v1654
        %1657 = vrot.lane.b32.xlu0 %v1165, 96
        %v1658 = vpop.permute.xlu0 %1657
        %1659 = vrot.lane.b32.xlu0 %v1166, 96
        %v1660 = vpop.permute.xlu0 %1659
        %1661 = vrot.lane.b32.xlu0 %v1167, 96
        %v1662 = vpop.permute.xlu0 %1661
        %1663 = vrot.lane.b32.xlu0 %v1168, 96
        %v1664 = vpop.permute.xlu0 %1663
        %1665 = vrot.lane.b32.xlu0 %v1169, 96
        %v1666 = vpop.permute.xlu0 %1665
        %1667 = vrot.lane.b32.xlu0 %v1170, 96
        %v1668 = vpop.permute.xlu0 %1667
        %1669 = vrot.lane.b32.xlu0 %v1171, 96
        %v1670 = vpop.permute.xlu0 %1669
        %1671 = vrot.lane.b32.xlu0 %v1172, 96
        %v1672 = vpop.permute.xlu0 %1671
        %1673 = vrot.lane.b32.xlu0 %v1173, 96
        %v1674 = vpop.permute.xlu0 %1673
        %1675 = vrot.lane.b32.xlu0 %v1174, 96
        %v1676 = vpop.permute.xlu0 %1675
        %1677 = vrot.lane.b32.xlu0 %v1175, 96
        %v1678 = vpop.permute.xlu0 %1677
        %1679 = vrot.lane.b32.xlu0 %v1176, 96
        %v1680 = vpop.permute.xlu0 %1679
        %1681 = vrot.lane.b32.xlu0 %v1177, 96
        %v1682 = vpop.permute.xlu0 %1681
        %1683 = vrot.lane.b32.xlu0 %v1178, 96
        %v1684 = vpop.permute.xlu0 %1683
        %1685 = vrot.lane.b32.xlu0 %v1537, 96
        %v1686 = vpop.permute.xlu0 %1685
        %1687 = vrot.lane.b32.xlu0 %v1656, 96
        %v1688 = vpop.permute.xlu0 %1687
        %v1690 = vunpack.c.l.b16 %v1098
        %v1691 = vpack.c.b16 %v1690, %v1690
        %v1693 = vshrl.u32 %v1656, 16
        %v1695 = vshll.u32 %v1656, 16
        %v1697 = vrot.slane %v1695, 1
        %v1698 = vor.u32 %v1693, %v1697
        %v1700 = vshll.u32 %v1691, 16
        %v1702 = vrot.slane %v1700, 1
        %v1703 = vsel %vm1227, %v1698, %v1702
        %1704 = vrot.lane.b32.xlu0 %v1263, 112
        %v1705 = vpop.permute.xlu0 %1704
        %1706 = vrot.lane.b32.xlu0 %v1275, 112
        %v1707 = vpop.permute.xlu0 %1706
        %1708 = vrot.lane.b32.xlu0 %v1287, 112
        %v1709 = vpop.permute.xlu0 %1708
        %1710 = vrot.lane.b32.xlu0 %v1299, 112
        %v1711 = vpop.permute.xlu0 %1710
        %1712 = vrot.lane.b32.xlu0 %v1311, 112
        %v1713 = vpop.permute.xlu0 %1712
        %1714 = vrot.lane.b32.xlu0 %v1323, 112
        %v1715 = vpop.permute.xlu0 %1714
        %1716 = vrot.lane.b32.xlu0 %v1335, 112
        %v1717 = vpop.permute.xlu0 %1716
        %1718 = vrot.lane.b32.xlu0 %v1347, 112
        %v1719 = vpop.permute.xlu0 %1718
        %1720 = vrot.lane.b32.xlu0 %v1359, 112
        %v1721 = vpop.permute.xlu0 %1720
        %1722 = vrot.lane.b32.xlu0 %v1371, 112
        %v1723 = vpop.permute.xlu0 %1722
        %1724 = vrot.lane.b32.xlu0 %v1383, 112
        %v1725 = vpop.permute.xlu0 %1724
        %1726 = vrot.lane.b32.xlu0 %v1395, 112
        %v1727 = vpop.permute.xlu0 %1726
        %1728 = vrot.lane.b32.xlu0 %v1407, 112
        %v1729 = vpop.permute.xlu0 %1728
        %1730 = vrot.lane.b32.xlu0 %v1419, 112
        %v1731 = vpop.permute.xlu0 %1730
        %1732 = vrot.lane.b32.xlu0 %v1584, 112
        %v1733 = vpop.permute.xlu0 %1732
        %1734 = vrot.lane.b32.xlu0 %v1703, 112
        %v1735 = vpop.permute.xlu0 %1734
        %v1736 = vrot.slane %v1656, 1
        %v1737 = vrot.slane %v1691, 1
        %v1738 = vsel %vm1452, %v1736, %v1737
        %vm1739 = vcmask 130048
        %v1741 = vsel %vm1739, %v1163, %v1421
        %v1743 = vsel %vm1739, %v1164, %v1423
        %v1745 = vsel %vm1739, %v1165, %v1425
        %v1747 = vsel %vm1739, %v1166, %v1427
        %v1749 = vsel %vm1739, %v1167, %v1429
        %v1751 = vsel %vm1739, %v1168, %v1431
        %v1753 = vsel %vm1739, %v1169, %v1433
        %v1755 = vsel %vm1739, %v1170, %v1435
        %v1757 = vsel %vm1739, %v1171, %v1437
        %v1759 = vsel %vm1739, %v1172, %v1439
        %v1761 = vsel %vm1739, %v1173, %v1441
        %v1763 = vsel %vm1739, %v1174, %v1443
        %v1765 = vsel %vm1739, %v1175, %v1445
        %v1767 = vsel %vm1739, %v1176, %v1447
        %v1769 = vsel %vm1739, %v1177, %v1449
        %v1771 = vsel %vm1739, %v1178, %v1451
        %v1773 = vsel %vm314, %v1741, %v1502
        %v1775 = vsel %vm314, %v1743, %v1504
        %v1777 = vsel %vm314, %v1745, %v1506
        %v1779 = vsel %vm314, %v1747, %v1508
        %v1781 = vsel %vm314, %v1749, %v1510
        %v1783 = vsel %vm314, %v1751, %v1512
        %v1785 = vsel %vm314, %v1753, %v1514
        %v1787 = vsel %vm314, %v1755, %v1516
        %v1789 = vsel %vm314, %v1757, %v1518
        %v1791 = vsel %vm314, %v1759, %v1520
        %v1793 = vsel %vm314, %v1761, %v1522
        %v1795 = vsel %vm314, %v1763, %v1524
        %v1797 = vsel %vm314, %v1765, %v1526
        %v1799 = vsel %vm314, %v1767, %v1528
        %v1801 = vsel %vm314, %v1769, %v1530
        %v1803 = vsel %vm314, %v1771, %v1532
        %vm1804 = vcmask 392192
        %v1806 = vsel %vm1804, %v1773, %v1539
        %v1808 = vsel %vm1804, %v1775, %v1541
        %v1810 = vsel %vm1804, %v1777, %v1543
        %v1812 = vsel %vm1804, %v1779, %v1545
        %v1814 = vsel %vm1804, %v1781, %v1547
        %v1816 = vsel %vm1804, %v1783, %v1549
        %v1818 = vsel %vm1804, %v1785, %v1551
        %v1820 = vsel %vm1804, %v1787, %v1553
        %v1822 = vsel %vm1804, %v1789, %v1555
        %v1824 = vsel %vm1804, %v1791, %v1557
        %v1826 = vsel %vm1804, %v1793, %v1559
        %v1828 = vsel %vm1804, %v1795, %v1561
        %v1830 = vsel %vm1804, %v1797, %v1563
        %v1832 = vsel %vm1804, %v1799, %v1565
        %v1834 = vsel %vm1804, %v1801, %v1567
        %v1836 = vsel %vm1804, %v1803, %v1569
        %vm1837 = vcmask 523264
        %v1839 = vsel %vm1837, %v1806, %v1586
        %v1841 = vsel %vm1837, %v1808, %v1588
        %v1843 = vsel %vm1837, %v1810, %v1590
        %v1845 = vsel %vm1837, %v1812, %v1592
        %v1847 = vsel %vm1837, %v1814, %v1594
        %v1849 = vsel %vm1837, %v1816, %v1596
        %v1851 = vsel %vm1837, %v1818, %v1598
        %v1853 = vsel %vm1837, %v1820, %v1600
        %v1855 = vsel %vm1837, %v1822, %v1602
        %v1857 = vsel %vm1837, %v1824, %v1604
        %v1859 = vsel %vm1837, %v1826, %v1606
        %v1861 = vsel %vm1837, %v1828, %v1608
        %v1863 = vsel %vm1837, %v1830, %v1610
        %v1865 = vsel %vm1837, %v1832, %v1612
        %v1867 = vsel %vm1837, %v1834, %v1614
        %v1869 = vsel %vm1837, %v1836, %v1616
        %vm1870 = vcmask 654336
        %v1872 = vsel %vm1870, %v1839, %v1621
        %v1874 = vsel %vm1870, %v1841, %v1623
        %v1876 = vsel %vm1870, %v1843, %v1625
        %v1878 = vsel %vm1870, %v1845, %v1627
        %v1880 = vsel %vm1870, %v1847, %v1629
        %v1882 = vsel %vm1870, %v1849, %v1631
        %v1884 = vsel %vm1870, %v1851, %v1633
        %v1886 = vsel %vm1870, %v1853, %v1635
        %v1888 = vsel %vm1870, %v1855, %v1637
        %v1890 = vsel %vm1870, %v1857, %v1639
        %v1892 = vsel %vm1870, %v1859, %v1641
        %v1894 = vsel %vm1870, %v1861, %v1643
        %v1896 = vsel %vm1870, %v1863, %v1645
        %v1898 = vsel %vm1870, %v1865, %v1647
        %v1900 = vsel %vm1870, %v1867, %v1649
        %v1902 = vsel %vm1870, %v1869, %v1651
        %vm1903 = vcmask 785408
        %v1905 = vsel %vm1903, %v1872, %v1658
        %v1907 = vsel %vm1903, %v1874, %v1660
        %v1909 = vsel %vm1903, %v1876, %v1662
        %v1911 = vsel %vm1903, %v1878, %v1664
        %v1913 = vsel %vm1903, %v1880, %v1666
        %v1915 = vsel %vm1903, %v1882, %v1668
        %v1917 = vsel %vm1903, %v1884, %v1670
        %v1919 = vsel %vm1903, %v1886, %v1672
        %v1921 = vsel %vm1903, %v1888, %v1674
        %v1923 = vsel %vm1903, %v1890, %v1676
        %v1925 = vsel %vm1903, %v1892, %v1678
        %v1927 = vsel %vm1903, %v1894, %v1680
        %v1929 = vsel %vm1903, %v1896, %v1682
        %v1931 = vsel %vm1903, %v1898, %v1684
        %v1933 = vsel %vm1903, %v1900, %v1686
        %v1935 = vsel %vm1903, %v1902, %v1688
        %vm1936 = vcmask 916480
        %v1938 = vsel %vm1936, %v1905, %v1705
        %v1941 = vsel %vm1936, %v1907, %v1707
        %v1944 = vsel %vm1936, %v1909, %v1709
        %v1947 = vsel %vm1936, %v1911, %v1711
        %v1950 = vsel %vm1936, %v1913, %v1713
        %v1953 = vsel %vm1936, %v1915, %v1715
        %v1956 = vsel %vm1936, %v1917, %v1717
        %v1959 = vsel %vm1936, %v1919, %v1719
        %v1962 = vsel %vm1936, %v1921, %v1721
        %v1965 = vsel %vm1936, %v1923, %v1723
        %v1968 = vsel %vm1936, %v1925, %v1725
        %v1971 = vsel %vm1936, %v1927, %v1727
        %v1974 = vsel %vm1936, %v1929, %v1729
        %v1977 = vsel %vm1936, %v1931, %v1731
        %v1980 = vsel %vm1936, %v1933, %v1733
        %v1983 = vsel %vm1936, %v1935, %v1735
        %v1985 = vld [vmem:[%s3] sm:$0xf]
        %v1986 = vld [vmem:[%s3 + $0x4] sm:$0xf]
        %v1987 = vld [vmem:[%s3 + $0x8] sm:$0xf]
        %v1988 = vld [vmem:[%s3 + $0xc] sm:$0xf]
        %v1989 = vld [vmem:[%s3 + $0x10] sm:$0xf]
        %v1990 = vld [vmem:[%s3 + $0x14] sm:$0xf]
        %v1991 = vld [vmem:[%s3 + $0x18] sm:$0xf]
        %v1992 = vld [vmem:[%s3 + $0x1c] sm:$0xf]
        %v1993 = vld [vmem:[%s3 + $0x20] sm:$0xf]
        %v1994 = vld [vmem:[%s3 + $0x24] sm:$0xf]
        %v1995 = vld [vmem:[%s3 + $0x28] sm:$0xf]
        %v1996 = vld [vmem:[%s3 + $0x2c] sm:$0xf]
        %v1997 = vld [vmem:[%s3 + $0x30] sm:$0xf]
        %v1998 = vld [vmem:[%s3 + $0x34] sm:$0xf]
        %v1999 = vld [vmem:[%s3 + $0x38] sm:$0xf]
        %v2000 = vld [vmem:[%s3 + $0x3c] sm:$0xf]
        %v2001 = vld [vmem:[%s3 + $0x40] sm:$0xf]
        %v2002 = vld [vmem:[%s3 + $0x44] sm:$0xf]
        %v2003 = vld [vmem:[%s4] sm:$0x1]
        %v2005 = vperm.slane %v2003, 0
        %v2025 = vunpack.c.l.b16 %v1985
        %v2026 = vunpack.c.l.b16 %v1986
        %v2027 = vunpack.c.l.b16 %v1987
        %v2028 = vunpack.c.l.b16 %v1988
        %v2029 = vunpack.c.l.b16 %v1989
        %v2030 = vunpack.c.l.b16 %v1990
        %v2031 = vunpack.c.l.b16 %v1991
        %v2032 = vunpack.c.l.b16 %v1992
        %v2033 = vunpack.c.l.b16 %v1993
        %v2034 = vunpack.c.l.b16 %v1994
        %v2035 = vunpack.c.l.b16 %v1995
        %v2036 = vunpack.c.l.b16 %v1996
        %v2037 = vunpack.c.l.b16 %v1997
        %v2038 = vunpack.c.l.b16 %v1998
        %v2039 = vunpack.c.l.b16 %v1999
        %v2040 = vunpack.c.l.b16 %v2000
        %v2041 = vunpack.c.l.b16 %v2001
        %v2042 = vunpack.c.l.b16 %v2002
        %v2043 = vpack.c.b16 %v2026, %v2025
        %v2044 = vpack.c.b16 %v2028, %v2027
        %v2045 = vpack.c.b16 %v2030, %v2029
        %v2046 = vpack.c.b16 %v2032, %v2031
        %v2047 = vpack.c.b16 %v2034, %v2033
        %v2048 = vpack.c.b16 %v2036, %v2035
        %v2049 = vpack.c.b16 %v2038, %v2037
        %v2050 = vpack.c.b16 %v2040, %v2039
        %v2051 = vpack.c.b16 %v2042, %v2041
        %v2062 = vsel %vm1739, %v1461, 0
        %v2065 = vsel %vm1739, %v1464, 0
        %v2068 = vsel %vm1739, %v1467, 0
        %v2071 = vsel %vm1739, %v1470, 0
        %v2074 = vsel %vm1739, %v1473, 0
        %v2077 = vsel %vm1739, %v1476, 0
        %v2080 = vsel %vm1739, %v1479, 0
        %v2083 = vsel %vm1739, %v1482, 0
        %v2086 = vsel %vm1739, %v1485, 0
        %v2089 = vsel %vm1739, %v1488, 0
        %v2092 = vsel %vm1739, %v1491, 0
        %v2095 = vsel %vm1739, %v1494, 0
        %v2098 = vsel %vm1739, %v1497, 0
        %v2101 = vsel %vm1739, %v1500, 0
        %v2104 = vsel %vm1739, %v1619, 0
        %v2107 = vsel %vm1739, %v1738, 0
        %2109 = vmatpush.bf16.msra.mxu0 %v2050
        %2110 = vmatpush.bf16.msra.mxu0 %v2049
        %2111 = vmatpush.bf16.msra.mxu0 %v2048
        %2112 = vmatpush.bf16.msra.mxu0 %v2047
        %2113 = vmatpush.bf16.msra.mxu0 %v2046
        %2114 = vmatpush.bf16.msra.mxu0 %v2045
        %2115 = vmatpush.bf16.msra.mxu0 %v2044
        %2116 = vmatpush.bf16.msra.mxu0 %v2043
        %2117 = vmatmul.bf16.gmra.mxu0 %v1938
        %v2118 = vpop.f32.mrf.mxu0
        %v2119 = vadd.f32 %v2005, %v2118
        %v2120 = vpop.f32.mrf.mxu0
        %v2121 = vadd.f32 %v2005, %v2120
        %2122 = vmatmul.bf16.gmra.mxu0 %v1941
        %v2123 = vpop.f32.mrf.mxu0
        %v2124 = vadd.f32 %v2005, %v2123
        %v2125 = vpop.f32.mrf.mxu0
        %v2126 = vadd.f32 %v2005, %v2125
        %2127 = vmatmul.bf16.gmra.mxu0 %v1944
        %v2128 = vpop.f32.mrf.mxu0
        %v2129 = vadd.f32 %v2005, %v2128
        %v2130 = vpop.f32.mrf.mxu0
        %v2131 = vadd.f32 %v2005, %v2130
        %2132 = vmatmul.bf16.gmra.mxu0 %v1947
        %v2133 = vpop.f32.mrf.mxu0
        %v2134 = vadd.f32 %v2005, %v2133
        %v2135 = vpop.f32.mrf.mxu0
        %v2136 = vadd.f32 %v2005, %v2135
        %2137 = vmatmul.bf16.gmra.mxu0 %v1950
        %v2138 = vpop.f32.mrf.mxu0
        %v2139 = vadd.f32 %v2005, %v2138
        %v2140 = vpop.f32.mrf.mxu0
        %v2141 = vadd.f32 %v2005, %v2140
        %2142 = vmatmul.bf16.gmra.mxu0 %v1953
        %v2143 = vpop.f32.mrf.mxu0
        %v2144 = vadd.f32 %v2005, %v2143
        %v2145 = vpop.f32.mrf.mxu0
        %v2146 = vadd.f32 %v2005, %v2145
        %2147 = vmatmul.bf16.gmra.mxu0 %v1956
        %v2148 = vpop.f32.mrf.mxu0
        %v2149 = vadd.f32 %v2005, %v2148
        %v2150 = vpop.f32.mrf.mxu0
        %v2151 = vadd.f32 %v2005, %v2150
        %2152 = vmatmul.bf16.gmra.mxu0 %v1959
        %v2153 = vpop.f32.mrf.mxu0
        %v2154 = vadd.f32 %v2005, %v2153
        %v2155 = vpop.f32.mrf.mxu0
        %v2156 = vadd.f32 %v2005, %v2155
        %2157 = vmatmul.bf16.gmra.mxu0 %v1962
        %v2158 = vpop.f32.mrf.mxu0
        %v2159 = vadd.f32 %v2005, %v2158
        %v2160 = vpop.f32.mrf.mxu0
        %v2161 = vadd.f32 %v2005, %v2160
        %2162 = vmatmul.bf16.gmra.mxu0 %v1965
        %v2163 = vpop.f32.mrf.mxu0
        %v2164 = vadd.f32 %v2005, %v2163
        %v2165 = vpop.f32.mrf.mxu0
        %v2166 = vadd.f32 %v2005, %v2165
        %2167 = vmatmul.bf16.gmra.mxu0 %v1968
        %v2168 = vpop.f32.mrf.mxu0
        %v2169 = vadd.f32 %v2005, %v2168
        %v2170 = vpop.f32.mrf.mxu0
        %v2171 = vadd.f32 %v2005, %v2170
        %2172 = vmatmul.bf16.gmra.mxu0 %v1971
        %v2173 = vpop.f32.mrf.mxu0
        %v2174 = vadd.f32 %v2005, %v2173
        %v2175 = vpop.f32.mrf.mxu0
        %v2176 = vadd.f32 %v2005, %v2175
        %2177 = vmatmul.bf16.gmra.mxu0 %v1974
        %v2178 = vpop.f32.mrf.mxu0
        %v2179 = vadd.f32 %v2005, %v2178
        %v2180 = vpop.f32.mrf.mxu0
        %v2181 = vadd.f32 %v2005, %v2180
        %2182 = vmatmul.bf16.gmra.mxu0 %v1977
        %v2183 = vpop.f32.mrf.mxu0
        %v2184 = vadd.f32 %v2005, %v2183
        %v2185 = vpop.f32.mrf.mxu0
        %v2186 = vadd.f32 %v2005, %v2185
        %2187 = vmatmul.bf16.gmra.mxu0 %v1980
        %v2188 = vpop.f32.mrf.mxu0
        %v2189 = vadd.f32 %v2005, %v2188
        %v2190 = vpop.f32.mrf.mxu0
        %v2191 = vadd.f32 %v2005, %v2190
        %2192 = vmatmul.bf16.gmra.mxu0 %v1983
        %v2193 = vpop.f32.mrf.mxu0
        %v2194 = vadd.f32 %v2005, %v2193
        %v2195 = vpop.f32.mrf.mxu0
        %v2196 = vadd.f32 %v2005, %v2195
        %2197 = vdwg.mxu0
        %2198 = vmatpush.bf16.msra.mxu0 0
        %2199 = vmatpush.bf16.msra.mxu0 0
        %2200 = vmatpush.bf16.msra.mxu0 0
        %2201 = vmatpush.bf16.msra.mxu0 0
        %2202 = vmatpush.bf16.msra.mxu0 0
        %2203 = vmatpush.bf16.msra.mxu0 0
        %2204 = vmatpush.bf16.msra.mxu0 0
        %2205 = vmatpush.bf16.msra.mxu0 %v2051
        %2206 = vmatmul.bf16.gmra.mxu0 %v2062
        %v2207 = vpop.f32.mrf.mxu0
        %v2208 = vadd.f32 %v2119, %v2207
        %v2209 = vpop.f32.mrf.mxu0
        %v2210 = vadd.f32 %v2121, %v2209
        %2211 = vmatmul.bf16.gmra.mxu0 %v2065
        %v2212 = vpop.f32.mrf.mxu0
        %v2213 = vadd.f32 %v2124, %v2212
        %v2214 = vpop.f32.mrf.mxu0
        %v2215 = vadd.f32 %v2126, %v2214
        %2216 = vmatmul.bf16.gmra.mxu0 %v2068
        %v2217 = vpop.f32.mrf.mxu0
        %v2218 = vadd.f32 %v2129, %v2217
        %v2219 = vpop.f32.mrf.mxu0
        %v2220 = vadd.f32 %v2131, %v2219
        %2221 = vmatmul.bf16.gmra.mxu0 %v2071
        %v2222 = vpop.f32.mrf.mxu0
        %v2223 = vadd.f32 %v2134, %v2222
        %v2224 = vpop.f32.mrf.mxu0
        %v2225 = vadd.f32 %v2136, %v2224
        %2226 = vmatmul.bf16.gmra.mxu0 %v2074
        %v2227 = vpop.f32.mrf.mxu0
        %v2228 = vadd.f32 %v2139, %v2227
        %v2229 = vpop.f32.mrf.mxu0
        %v2230 = vadd.f32 %v2141, %v2229
        %2231 = vmatmul.bf16.gmra.mxu0 %v2077
        %v2232 = vpop.f32.mrf.mxu0
        %v2233 = vadd.f32 %v2144, %v2232
        %v2234 = vpop.f32.mrf.mxu0
        %v2235 = vadd.f32 %v2146, %v2234
        %2236 = vmatmul.bf16.gmra.mxu0 %v2080
        %v2237 = vpop.f32.mrf.mxu0
        %v2238 = vadd.f32 %v2149, %v2237
        %v2239 = vpop.f32.mrf.mxu0
        %v2240 = vadd.f32 %v2151, %v2239
        %2241 = vmatmul.bf16.gmra.mxu0 %v2083
        %v2242 = vpop.f32.mrf.mxu0
        %v2243 = vadd.f32 %v2154, %v2242
        %v2244 = vpop.f32.mrf.mxu0
        %v2245 = vadd.f32 %v2156, %v2244
        %2246 = vmatmul.bf16.gmra.mxu0 %v2086
        %v2247 = vpop.f32.mrf.mxu0
        %v2248 = vadd.f32 %v2159, %v2247
        %v2249 = vpop.f32.mrf.mxu0
        %v2250 = vadd.f32 %v2161, %v2249
        %2251 = vmatmul.bf16.gmra.mxu0 %v2089
        %v2252 = vpop.f32.mrf.mxu0
        %v2253 = vadd.f32 %v2164, %v2252
        %v2254 = vpop.f32.mrf.mxu0
        %v2255 = vadd.f32 %v2166, %v2254
        %2256 = vmatmul.bf16.gmra.mxu0 %v2092
        %v2257 = vpop.f32.mrf.mxu0
        %v2258 = vadd.f32 %v2169, %v2257
        %v2259 = vpop.f32.mrf.mxu0
        %v2260 = vadd.f32 %v2171, %v2259
        %2261 = vmatmul.bf16.gmra.mxu0 %v2095
        %v2262 = vpop.f32.mrf.mxu0
        %v2263 = vadd.f32 %v2174, %v2262
        %v2264 = vpop.f32.mrf.mxu0
        %v2265 = vadd.f32 %v2176, %v2264
        %2266 = vmatmul.bf16.gmra.mxu0 %v2098
        %v2267 = vpop.f32.mrf.mxu0
        %v2268 = vadd.f32 %v2179, %v2267
        %v2269 = vpop.f32.mrf.mxu0
        %v2270 = vadd.f32 %v2181, %v2269
        %2271 = vmatmul.bf16.gmra.mxu0 %v2101
        %v2272 = vpop.f32.mrf.mxu0
        %v2273 = vadd.f32 %v2184, %v2272
        %v2274 = vpop.f32.mrf.mxu0
        %v2275 = vadd.f32 %v2186, %v2274
        %2276 = vmatmul.bf16.gmra.mxu0 %v2104
        %v2277 = vpop.f32.mrf.mxu0
        %v2278 = vadd.f32 %v2189, %v2277
        %v2279 = vpop.f32.mrf.mxu0
        %v2280 = vadd.f32 %v2191, %v2279
        %2281 = vmatmul.bf16.gmra.mxu0 %v2107
        %v2282 = vpop.f32.mrf.mxu0
        %v2283 = vadd.f32 %v2194, %v2282
        %v2284 = vpop.f32.mrf.mxu0
        %v2285 = vadd.f32 %v2196, %v2284
        %2286 = vdwg.mxu0
        %v2287 = vmul.f32 %v2208, 0.1
        %v2288 = vmul.f32 %v2210, 0.1
        %v2289 = vmul.f32 %v2213, 0.1
        %v2290 = vmul.f32 %v2215, 0.1
        %v2291 = vmul.f32 %v2218, 0.1
        %v2292 = vmul.f32 %v2220, 0.1
        %v2293 = vmul.f32 %v2223, 0.1
        %v2294 = vmul.f32 %v2225, 0.1
        %v2295 = vmul.f32 %v2228, 0.1
        %v2296 = vmul.f32 %v2230, 0.1
        %v2297 = vmul.f32 %v2233, 0.1
        %v2298 = vmul.f32 %v2235, 0.1
        %v2299 = vmul.f32 %v2238, 0.1
        %v2300 = vmul.f32 %v2240, 0.1
        %v2301 = vmul.f32 %v2243, 0.1
        %v2302 = vmul.f32 %v2245, 0.1
        %v2303 = vmul.f32 %v2248, 0.1
        %v2304 = vmul.f32 %v2250, 0.1
        %v2305 = vmul.f32 %v2253, 0.1
        %v2306 = vmul.f32 %v2255, 0.1
        %v2307 = vmul.f32 %v2258, 0.1
        %v2308 = vmul.f32 %v2260, 0.1
        %v2309 = vmul.f32 %v2263, 0.1
        %v2310 = vmul.f32 %v2265, 0.1
        %v2311 = vmul.f32 %v2268, 0.1
        %v2312 = vmul.f32 %v2270, 0.1
        %v2313 = vmul.f32 %v2273, 0.1
        %v2314 = vmul.f32 %v2275, 0.1
        %v2315 = vmul.f32 %v2278, 0.1
        %v2316 = vmul.f32 %v2280, 0.1
        %v2317 = vmul.f32 %v2283, 0.1
        %v2318 = vmul.f32 %v2285, 0.1
        %v2319 = vmax.f32 %v2208, %v2287
        %v2320 = vmax.f32 %v2210, %v2288
        %v2321 = vmax.f32 %v2213, %v2289
        %v2322 = vmax.f32 %v2215, %v2290
        %v2323 = vmax.f32 %v2218, %v2291
        %v2324 = vmax.f32 %v2220, %v2292
        %v2325 = vmax.f32 %v2223, %v2293
        %v2326 = vmax.f32 %v2225, %v2294
        %v2327 = vmax.f32 %v2228, %v2295
        %v2328 = vmax.f32 %v2230, %v2296
        %v2329 = vmax.f32 %v2233, %v2297
        %v2330 = vmax.f32 %v2235, %v2298
        %v2331 = vmax.f32 %v2238, %v2299
        %v2332 = vmax.f32 %v2240, %v2300
        %v2333 = vmax.f32 %v2243, %v2301
        %v2334 = vmax.f32 %v2245, %v2302
        %v2335 = vmax.f32 %v2248, %v2303
        %v2336 = vmax.f32 %v2250, %v2304
        %v2337 = vmax.f32 %v2253, %v2305
        %v2338 = vmax.f32 %v2255, %v2306
        %v2339 = vmax.f32 %v2258, %v2307
        %v2340 = vmax.f32 %v2260, %v2308
        %v2341 = vmax.f32 %v2263, %v2309
        %v2342 = vmax.f32 %v2265, %v2310
        %v2343 = vmax.f32 %v2268, %v2311
        %v2344 = vmax.f32 %v2270, %v2312
        %v2345 = vmax.f32 %v2273, %v2313
        %v2346 = vmax.f32 %v2275, %v2314
        %v2347 = vmax.f32 %v2278, %v2315
        %v2348 = vmax.f32 %v2280, %v2316
        %v2349 = vmax.f32 %v2283, %v2317
        %v2350 = vmax.f32 %v2285, %v2318
        %v2351 = vadd.f32 %v2319, %v246
        %v2352 = vadd.f32 %v2320, %v247
        %v2353 = vadd.f32 %v2321, %v248
        %v2354 = vadd.f32 %v2322, %v249
        %v2355 = vadd.f32 %v2323, %v250
        %v2356 = vadd.f32 %v2324, %v251
        %v2357 = vadd.f32 %v2325, %v252
        %v2358 = vadd.f32 %v2326, %v253
        %v2359 = vadd.f32 %v2327, %v254
        %v2360 = vadd.f32 %v2328, %v255
        %v2361 = vadd.f32 %v2329, %v256
        %v2362 = vadd.f32 %v2330, %v257
        %v2363 = vadd.f32 %v2331, %v258
        %v2364 = vadd.f32 %v2332, %v259
        %v2365 = vadd.f32 %v2333, %v260
        %v2366 = vadd.f32 %v2334, %v261
        %v2367 = vadd.f32 %v2335, %v262
        %v2368 = vadd.f32 %v2336, %v263
        %v2369 = vadd.f32 %v2337, %v264
        %v2370 = vadd.f32 %v2338, %v265
        %v2371 = vadd.f32 %v2339, %v266
        %v2372 = vadd.f32 %v2340, %v267
        %v2373 = vadd.f32 %v2341, %v268
        %v2374 = vadd.f32 %v2342, %v269
        %v2375 = vadd.f32 %v2343, %v270
        %v2376 = vadd.f32 %v2344, %v271
        %v2377 = vadd.f32 %v2345, %v272
        %v2378 = vadd.f32 %v2346, %v273
        %v2379 = vadd.f32 %v2347, %v274
        %v2380 = vadd.f32 %v2348, %v275
        %v2381 = vadd.f32 %v2349, %v276
        %v2382 = vadd.f32 %v2350, %v277
        %2383 = vst.msk [vmem:[%s244] sm:$0xff] %vm314, %v2351
        %2384 = vst.msk [vmem:[%s244 + $0x8] sm:$0xff] %vm314, %v2352
        %2385 = vst.msk [vmem:[%s244 + $0x10] sm:$0xff] %vm314, %v2353
        %2386 = vst.msk [vmem:[%s244 + $0x18] sm:$0xff] %vm314, %v2354
        %2387 = vst.msk [vmem:[%s244 + $0x20] sm:$0xff] %vm314, %v2355
        %2388 = vst.msk [vmem:[%s244 + $0x28] sm:$0xff] %vm314, %v2356
        %2389 = vst.msk [vmem:[%s244 + $0x30] sm:$0xff] %vm314, %v2357
        %2390 = vst.msk [vmem:[%s244 + $0x38] sm:$0xff] %vm314, %v2358
        %2391 = vst.msk [vmem:[%s244 + $0x40] sm:$0xff] %vm314, %v2359
        %2392 = vst.msk [vmem:[%s244 + $0x48] sm:$0xff] %vm314, %v2360
        %2393 = vst.msk [vmem:[%s244 + $0x50] sm:$0xff] %vm314, %v2361
        %2394 = vst.msk [vmem:[%s244 + $0x58] sm:$0xff] %vm314, %v2362
        %2395 = vst.msk [vmem:[%s244 + $0x60] sm:$0xff] %vm314, %v2363
        %2396 = vst.msk [vmem:[%s244 + $0x68] sm:$0xff] %vm314, %v2364
        %2397 = vst.msk [vmem:[%s244 + $0x70] sm:$0xff] %vm314, %v2365
        %2398 = vst.msk [vmem:[%s244 + $0x78] sm:$0xff] %vm314, %v2366
        %2399 = vst.msk [vmem:[%s244 + $0x80] sm:$0xff] %vm314, %v2367
        %2400 = vst.msk [vmem:[%s244 + $0x88] sm:$0xff] %vm314, %v2368
        %2401 = vst.msk [vmem:[%s244 + $0x90] sm:$0xff] %vm314, %v2369
        %2402 = vst.msk [vmem:[%s244 + $0x98] sm:$0xff] %vm314, %v2370
        %2403 = vst.msk [vmem:[%s244 + $0xa0] sm:$0xff] %vm314, %v2371
        %2404 = vst.msk [vmem:[%s244 + $0xa8] sm:$0xff] %vm314, %v2372
        %2405 = vst.msk [vmem:[%s244 + $0xb0] sm:$0xff] %vm314, %v2373
        %2406 = vst.msk [vmem:[%s244 + $0xb8] sm:$0xff] %vm314, %v2374
        %2407 = vst.msk [vmem:[%s244 + $0xc0] sm:$0xff] %vm314, %v2375
        %2408 = vst.msk [vmem:[%s244 + $0xc8] sm:$0xff] %vm314, %v2376
        %2409 = vst.msk [vmem:[%s244 + $0xd0] sm:$0xff] %vm314, %v2377
        %2410 = vst.msk [vmem:[%s244 + $0xd8] sm:$0xff] %vm314, %v2378
        %2411 = vst.msk [vmem:[%s244 + $0xe0] sm:$0xff] %vm314, %v2379
        %2412 = vst.msk [vmem:[%s244 + $0xe8] sm:$0xff] %vm314, %v2380
        %2413 = vst.msk [vmem:[%s244 + $0xf0] sm:$0xff] %vm314, %v2381
        %2414 = vst.msk [vmem:[%s244 + $0xf8] sm:$0xff] %vm314, %v2382
        %s2415 = sand.u32 %s140, 1
        %s2416 = scalar_lea.sflag [#allocation5], %s2415
        %s2417 = sand.u32 %s140, 1
        %s2418 = smul.addr %s2417, 256
        %s2419 = scalar_lea.vmem [#allocation6], %s2418
        // Predicated region
        $region45: #{tpu_custom_call.1} parent=39 // pred_check
          %p2420 = pneg %p150
        $region46: #{tpu_custom_call.1} parent=39 // pred_check_branch
          %2422 = sbr.rel (%p2420) target = $region48
        $region47: #{tpu_custom_call.1} parent=39 // pred_region
          %2424 = vsyncadd %s2416, 0
          %s2425 = smul.addr %s22, 32
          %s2426 = smul.addr %s2425, 8
          %s2427 = scalar_lea.hbm %s5, %s2426
          %s2428 = sshll.u32 %s2419, 4
          %s2429 = int_to_ptr.vmem [resolvable:$true] %s2428
          %s2430 = sshll.u32 %s2427, 4
          %s2431 = int_to_ptr.hbm [resolvable:$true] %s2430
          %2436 = dma.vmem_to_hbm [thread:$0]  %s2429, 4096, %s2431, %s2416, 128, 128, 8
        $region48: #{tpu_custom_call.1} parent=39 // pred_fallthru
          _
      $region40: #{tpu_custom_call.1} parent=5 // pred_fallthru
        _
      %p2437 = scmp.le.s32.totalorder 2, %s17
      // Predicated region
      $region49: #{tpu_custom_call.1} parent=5 // pred_check
        %p2438 = pneg %p2437
      $region50: #{tpu_custom_call.1} parent=5 // pred_check_branch
        %2440 = sbr.rel (%p2438) target = $region52
      $region51: #{tpu_custom_call.1} parent=5 // pred_region
        %s2441 = ssub.s32 %s17, 2
        // Predicated region
        $region53: #{tpu_custom_call.1} parent=51 // pred_check
          %p2442 = pneg %p156
        $region54: #{tpu_custom_call.1} parent=51 // pred_check_branch
          %2444 = sbr.rel (%p2442) target = $region56
        $region55: #{tpu_custom_call.1} parent=51 // pred_region
          %s2445 = sand.u32 %s141, 1
          %s2446 = scalar_lea.sflag [#allocation5], %s2445
          %s2447 = sand.u32 %s141, 1
          %s2448 = smul.addr %s2447, 256
          %s2449 = scalar_lea.vmem [#allocation6], %s2448
          %2451 = dma.done %s2446, 4096
        $region56: #{tpu_custom_call.1} parent=51 // pred_fallthru
          _
      $region52: #{tpu_custom_call.1} parent=5 // pred_fallthru
        _
    $region6: #{tpu_custom_call.1} parent=1 // loop_footer
      %s21 = sadd.s32 1, %s17
    $region7: #{tpu_custom_call.1} parent=1 // loop_footer_branch
      %16 = sbr.rel target = $region3
    $region8: #{tpu_custom_call.1} parent=1 // loop_exit
      _
    %2452 = vsyncpa [#allocation4], 1
    %s2453 = scalar_lea.sflag [#allocation4], 1
    %2454 = vsyncpa %s2453, 1
    %2455 = vsyncpa [#allocation5], 1
    %s2456 = scalar_lea.sflag [#allocation5], 1
    %2457 = vsyncpa %s2456, 1

</llo_original>
